<compile_context>
chip_gen: v5e
topology: v5e:2x2
jax: 0.10.0
libtpu: 0.0.40
codegen_flags: <defaults>
</compile_context>

<pallas_src>
import functools

import jax
import jax.numpy as jnp
from jax.experimental import pallas as pl
from jax.experimental.pallas import tpu as pltpu

LN_EPS = 1e-5    # F.layer_norm default eps
L2_EPS = 1e-12   # F.normalize default eps (clamp)


# ---------------------------------------------------------------------------
# Tiling helpers
# ---------------------------------------------------------------------------
def _pick_tile(n, cap):
    """Largest tile <= cap that divides n (falls back to n for tiny/odd n)."""
    for t in (cap, 512, 384, 256, 128, 64, 32, 16, 8):
        if t <= cap and n % t == 0:
            return t
    # TODO(synk): ragged sequence lengths (n with no nice divisor) need key masking.
    return n


def _kv_tile_cap():
    # v5e MXU is 4x128x128 -> tk=128 already fills it; v6e/v7x are 2x256x256.
    try:
        kind = jax.devices()[0].device_kind.lower()
    except Exception:  # pragma: no cover - defensive
        return 256
    return 128 if "v5" in kind else 256


# ---------------------------------------------------------------------------
# Kernel 1: LayerNorm + Q/K/V projections + rotary + l2norm + scales
#           (writes head-major [B, H, N, Dh] so the attention core is batched)
# ---------------------------------------------------------------------------
def ln_qkv_kernel(x_ref, g_ref, wq_ref, wk_ref, wv_ref, qs_ref, ks_ref, rt_ref,
                  q_ref, k_ref, v_ref, tmp_ref, *, scale):
    heads = q_ref.shape[1]
    dh = q_ref.shape[3]

    x = x_ref[0].astype(jnp.float32)                                   # [t, dim]
    mu = jnp.mean(x, axis=-1, keepdims=True)
    var = jnp.mean((x - mu) ** 2, axis=-1, keepdims=True)
    xn = ((x - mu) * jax.lax.rsqrt(var + LN_EPS)
          * g_ref[...].astype(jnp.float32)).astype(x_ref.dtype)        # MXU dtype

    cos2 = rt_ref[0]      # cos duplicated per (re, im) pair            [t, dh]
    s_odd = rt_ref[1]     # +sin at odd lanes, 0 elsewhere
    s_even = rt_ref[2]    # -sin at even lanes, 0 elsewhere

    def rope(t):
        # Pairwise rotation; the wrap-around lanes of the rolls are multiplied
        # by zero, so jnp.roll is safe here.  Rope is applied ONCE per element
        # (hoisted out of the attention kv loop).
        return (t * cos2 + jnp.roll(t, 1, axis=-1) * s_odd
                + jnp.roll(t, -1, axis=-1) * s_even)

    def l2n(t):
        ss = jnp.sum(t * t, axis=-1, keepdims=True)
        return t * jax.lax.rsqrt(jnp.maximum(ss, L2_EPS * L2_EPS))

    qs = qs_ref[...].astype(jnp.float32) * scale   # fold softmax scale into q
    ks = ks_ref[...].astype(jnp.float32)

    # TODO(synk): for very large dim/inner (v7x, dim~2048+), tile the projection
    # weights over their output dimension (extra grid axis) and single-buffer
    # the constant-index weight blocks to keep them inside the 64 MiB VMEM.

    # --- Q: project, rope, l2norm, scale, write head-major.
    tmp_ref[...] = jnp.dot(xn, wq_ref[...], preferred_element_type=jnp.float32)
    for h in range(heads):
        sl = slice(h * dh, (h + 1) * dh)
        q_ref[0, h] = (l2n(rope(tmp_ref[:, sl])) * qs).astype(q_ref.dtype)

    # --- K: same, with k scale (no softmax scale).
    tmp_ref[...] = jnp.dot(xn, wk_ref[...], preferred_element_type=jnp.float32)
    for h in range(heads):
        sl = slice(h * dh, (h + 1) * dh)
        k_ref[0, h] = (l2n(rope(tmp_ref[:, sl])) * ks).astype(k_ref.dtype)

    # --- V: project, write head-major.
    tmp_ref[...] = jnp.dot(xn, wv_ref[...], preferred_element_type=jnp.float32)
    for h in range(heads):
        sl = slice(h * dh, (h + 1) * dh)
        v_ref[0, h] = tmp_ref[:, sl].astype(v_ref.dtype)


def ln_qkv_rope(x, gamma, w_q, w_k, w_v, q_scale, k_scale, rope_tab,
                heads, dim_head, scale, seq_tile):
    b, n, dim = x.shape
    inner = w_q.shape[1]
    kernel = functools.partial(ln_qkv_kernel, scale=scale)
    qkv_spec = pl.BlockSpec((1, heads, seq_tile, dim_head),
                            lambda i, r: (i, 0, r, 0))
    out_sds = jax.ShapeDtypeStruct((b, heads, n, dim_head), x.dtype)
    return pl.pallas_call(
        kernel,
        out_shape=(out_sds, out_sds, out_sds),
        grid=(b, n // seq_tile),
        in_specs=[
            pl.BlockSpec((1, seq_tile, dim), lambda i, r: (i, r, 0)),
            pl.BlockSpec((1, dim), lambda i, r: (0, 0)),
            pl.BlockSpec((dim, inner), lambda i, r: (0, 0)),
            pl.BlockSpec((dim, inner), lambda i, r: (0, 0)),
            pl.BlockSpec((dim, inner), lambda i, r: (0, 0)),
            pl.BlockSpec((1, dim_head), lambda i, r: (0, 0)),
            pl.BlockSpec((1, dim_head), lambda i, r: (0, 0)),
            pl.BlockSpec((3, seq_tile, dim_head), lambda i, r: (0, r, 0)),
        ],
        out_specs=(qkv_spec, qkv_spec, qkv_spec),
        scratch_shapes=[pltpu.VMEM((seq_tile, inner), jnp.float32)],
        compiler_params=pltpu.CompilerParams(
            dimension_semantics=("parallel", "parallel"),
            vmem_limit_bytes=64 * 1024 * 1024),
    )(x, gamma, w_q, w_k, w_v, q_scale, k_scale, rope_tab)


# ---------------------------------------------------------------------------
# Kernel 2: flash-style attention core (batched over heads) + fused out-proj
# ---------------------------------------------------------------------------
def attn_core_kernel(q_ref, k_ref, v_ref, nk_ref, nv_ref, wo_ref, o_ref,
                     m_ref, l_ref, acc_ref):
    kv = pl.program_id(2)

    # ---- first kv block: seed the online softmax with the null-KV column.
    @pl.when(kv == 0)
    def _init():
        qf = q_ref[0].astype(jnp.float32)                              # [H, tq, dh]
        s_null = jnp.sum(qf * nk_ref[...], axis=-1, keepdims=True)     # [H, tq, 1]
        m_ref[...] = s_null
        l_ref[...] = jnp.ones_like(s_null)                             # exp(0)
        acc_ref[...] = jnp.broadcast_to(nv_ref[...], acc_ref.shape)    # exp(0)*null_v

    # ---- online-softmax update for this kv block (fully batched over heads).
    sim = jnp.einsum("hqd,hkd->hqk", q_ref[0], k_ref[0],
                     preferred_element_type=jnp.float32)               # [H, tq, tk]
    m_prev = m_ref[...]
    m_new = jnp.maximum(m_prev, jnp.max(sim, axis=-1, keepdims=True))
    alpha = jnp.exp(m_prev - m_new)
    p = jnp.exp(sim - m_new)
    l_ref[...] = alpha * l_ref[...] + jnp.sum(p, axis=-1, keepdims=True)
    acc_ref[...] = alpha * acc_ref[...] + jnp.einsum(
        "hqk,hkd->hqd", p.astype(v_ref.dtype), v_ref[0],
        preferred_element_type=jnp.float32)
    m_ref[...] = m_new

    # ---- last kv block: normalize and apply the (fused) output projection.
    @pl.when(kv == pl.num_programs(2) - 1)
    def _finalize():
        heads = acc_ref.shape[0]
        out = None
        for h in range(heads):
            oh = (acc_ref[h] * (1.0 / l_ref[h])).astype(wo_ref.dtype)  # exact
            ph = jnp.dot(oh, wo_ref[h], preferred_element_type=jnp.float32)
            out = ph if out is None else out + ph
        o_ref[0] = out.astype(o_ref.dtype)


def attn_core(q, k, v, nk, nv, w_out3, dim, tq, tk):
    b, heads, n, dh = q.shape
    return pl.pallas_call(
        attn_core_kernel,
        out_shape=jax.ShapeDtypeStruct((b, n, dim), q.dtype),
        grid=(b, n // tq, n // tk),
        in_specs=[
            pl.BlockSpec((1, heads, tq, dh), lambda i, qi, ki: (i, 0, qi, 0)),
            pl.BlockSpec((1, heads, tk, dh), lambda i, qi, ki: (i, 0, ki, 0)),
            pl.BlockSpec((1, heads, tk, dh), lambda i, qi, ki: (i, 0, ki, 0)),
            pl.BlockSpec((heads, 1, dh), lambda i, qi, ki: (0, 0, 0)),
            pl.BlockSpec((heads, 1, dh), lambda i, qi, ki: (0, 0, 0)),
            pl.BlockSpec((heads, dh, dim), lambda i, qi, ki: (0, 0, 0)),
        ],
        out_specs=pl.BlockSpec((1, tq, dim), lambda i, qi, ki: (i, qi, 0)),
        scratch_shapes=[
            pltpu.VMEM((heads, tq, 1), jnp.float32),    # running max
            pltpu.VMEM((heads, tq, 1), jnp.float32),    # running denom
            pltpu.VMEM((heads, tq, dh), jnp.float32),   # running accumulator
        ],
        compiler_params=pltpu.CompilerParams(
            dimension_semantics=("parallel", "parallel", "arbitrary"),
            vmem_limit_bytes=64 * 1024 * 1024),
    )(q, k, v, nk, nv, w_out3)


# ---------------------------------------------------------------------------
# Glue: rotary tables, parameter init, forward
# ---------------------------------------------------------------------------
def make_rope_tables(n, dim_head, freqs_cos, freqs_sin):
    # Interleaved (real, imag) channel layout:
    #   [0] cos duplicated per pair, [1] +sin at odd lanes, [2] -sin at even lanes.
    if freqs_cos is None:
        cos2 = jnp.ones((n, dim_head), jnp.float32)
        s_odd = jnp.zeros((n, dim_head), jnp.float32)
        s_even = jnp.zeros((n, dim_head), jnp.float32)
    else:
        z = jnp.zeros_like(freqs_sin)
        cos2 = jnp.repeat(freqs_cos, 2, axis=-1)
        s_odd = jnp.stack([z, freqs_sin], axis=-1).reshape(n, dim_head)
        s_even = jnp.stack([-freqs_sin, z], axis=-1).reshape(n, dim_head)
    return jnp.stack([cos2, s_odd, s_even], axis=0).astype(jnp.float32)


def init_params(key, dim, dim_head, heads, dtype=jnp.float32):
    inner = dim_head * heads
    ks = jax.random.split(key, 5)
    return {
        "gamma": jnp.ones((1, dim), dtype),                               # LayerNorm gamma
        "w_q": (jax.random.normal(ks[0], (dim, inner)) * dim ** -0.5).astype(dtype),
        "w_k": (jax.random.normal(ks[1], (dim, inner)) * dim ** -0.5).astype(dtype),
        "w_v": (jax.random.normal(ks[2], (dim, inner)) * dim ** -0.5).astype(dtype),
        "w_out": (jax.random.normal(ks[3], (inner, dim)) * inner ** -0.5).astype(dtype),
        "null_kv": jax.random.normal(ks[4], (2, heads, 1, dim_head)).astype(dtype),
        "q_scale": jnp.ones((1, dim_head), dtype),
        "k_scale": jnp.ones((1, dim_head), dtype),
    }


def attention_forward(params, x, heads, dim_head, scale=8.0,
                      freqs_cos=None, freqs_sin=None):
    # Self-attention path (cross_attend=False, context_mask=None, dropout=0).
    b, n, dim = x.shape

    ln_tile = _pick_tile(n, 512)          # mem-bound projection kernel: big tiles
    tq = _pick_tile(n, 256)
    tk = _pick_tile(n, _kv_tile_cap())    # 256 on v6e/v7x (fills 256-wide MXU), 128 on v5e

    rope_tab = make_rope_tables(n, dim_head, freqs_cos, freqs_sin)        # [3, n, dh]

    # LayerNorm + QKV projections + rope + l2norm + scales, head-major outputs.
    q, k, v = ln_qkv_rope(x, params["gamma"], params["w_q"], params["w_k"],
                          params["w_v"], params["q_scale"], params["k_scale"],
                          rope_tab, heads, dim_head, scale, ln_tile)       # [b,H,n,dh] x3

    # Null key/value: tiny parameter-only transform (l2norm + k_scale; no rope,
    # matching the torch concat-before-normalize semantics).
    nk = params["null_kv"][0].astype(jnp.float32).reshape(heads, 1, dim_head)
    nk = nk / jnp.maximum(jnp.linalg.norm(nk, axis=-1, keepdims=True), L2_EPS)
    nk = nk * params["k_scale"].astype(jnp.float32).reshape(1, 1, dim_head)
    nv = params["null_kv"][1].astype(jnp.float32).reshape(heads, 1, dim_head)

    # Output projection folded into the attention finalize (per-head slabs).
    w_out3 = params["w_out"].reshape(heads, dim_head, dim)

    return attn_core(q, k, v, nk, nv, w_out3, dim, tq, tk)
    # TODO(synk): cross-attention path (context / context_mask) and dropout>0 not implemented.


# ---------------------------------------------------------------------------
# Pure-JAX reference (mirrors the torch forward)
# ---------------------------------------------------------------------------
def apply_rotary(x, cos, sin):
    # x: [b, h, n, d];  cos/sin: [n, d//2]
    xf = x.astype(jnp.float32)
    xr, xi = xf[..., 0::2], xf[..., 1::2]
    out_r = xr * cos - xi * sin
    out_i = xr * sin + xi * cos
    return jnp.stack([out_r, out_i], axis=-1).reshape(xf.shape).astype(x.dtype)


def reference_forward(params, x, heads, dim_head, scale=8.0,
                      freqs_cos=None, freqs_sin=None):
    b, n, dim = x.shape
    inner = heads * dim_head
    xf = x.astype(jnp.float32)
    mu = jnp.mean(xf, axis=-1, keepdims=True)
    var = jnp.mean((xf - mu) ** 2, axis=-1, keepdims=True)
    xn = (xf - mu) / jnp.sqrt(var + LN_EPS) * params["gamma"].astype(jnp.float32)
    q = xn @ params["w_q"].astype(jnp.float32)
    k = xn @ params["w_k"].astype(jnp.float32)
    v = xn @ params["w_v"].astype(jnp.float32)

    def split_heads(t):
        return t.reshape(b, n, heads, dim_head).transpose(0, 2, 1, 3)

    q, k, v = map(split_heads, (q, k, v))
    if freqs_cos is not None:
        q = apply_rotary(q, freqs_cos, freqs_sin)
        k = apply_rotary(k, freqs_cos, freqs_sin)

    nk = jnp.broadcast_to(params["null_kv"][0][None].astype(jnp.float32),
                          (b, heads, 1, dim_head))
    nv = jnp.broadcast_to(params["null_kv"][1][None].astype(jnp.float32),
                          (b, heads, 1, dim_head))
    k = jnp.concatenate([nk, k], axis=2)
    v = jnp.concatenate([nv, v], axis=2)

    def l2n(t):
        nrm = jnp.linalg.norm(t, axis=-1, keepdims=True)
        return t / jnp.maximum(nrm, L2_EPS)

    q = l2n(q) * params["q_scale"][0].astype(jnp.float32)
    k = l2n(k) * params["k_scale"][0].astype(jnp.float32)
    sim = jnp.einsum("bhid,bhjd->bhij", q, k) * scale
    attn = jax.nn.softmax(sim, axis=-1)
    out = jnp.einsum("bhij,bhjd->bhid", attn, v)
    out = out.transpose(0, 2, 1, 3).reshape(b, n, inner)
    return out @ params["w_out"].astype(jnp.float32)


# ---------------------------------------------------------------------------
if __name__ == "__main__":
    key = jax.random.PRNGKey(0)
    b, n, dim, heads, dim_head = 2, 8, 32, 4, 16
    kx, kp = jax.random.split(key, 2)
    x = jax.random.normal(kx, (b, n, dim), jnp.float32)
    params = init_params(kp, dim, dim_head, heads)

    # Precomputed rotary frequencies (cos/sin of freqs_cis), shape [n, d/2].
    half = dim_head // 2
    inv_freq = 1.0 / (10000.0 ** (jnp.arange(half, dtype=jnp.float32) / half))
    ang = jnp.outer(jnp.arange(n, dtype=jnp.float32), inv_freq)
    freqs_cos, freqs_sin = jnp.cos(ang), jnp.sin(ang)

    out = attention_forward(params, x, heads, dim_head, scale=8.0,
                            freqs_cos=freqs_cos, freqs_sin=freqs_sin)
    out = jax.block_until_ready(out)

    ref = reference_forward(params, x, heads, dim_head, scale=8.0,
                            freqs_cos=freqs_cos, freqs_sin=freqs_sin)
    assert out.shape == (b, n, dim)
    assert jnp.allclose(out, ref, atol=5e-3, rtol=5e-3), \
        f"max err {jnp.max(jnp.abs(out - ref))}"
    print("KERNEL_OK")
</pallas_src>

<mosaic_0001>
module attributes {stable_mosaic.version = 11 : i64} {
  func.func @ln_qkv_kernel(%arg0: i32, %arg1: i32, %arg2: memref<1x8x32xf32, #tpu.memory_space<vmem>>, %arg3: memref<1x32xf32, #tpu.memory_space<vmem>>, %arg4: memref<32x64xf32, #tpu.memory_space<vmem>>, %arg5: memref<32x64xf32, #tpu.memory_space<vmem>>, %arg6: memref<32x64xf32, #tpu.memory_space<vmem>>, %arg7: memref<1x16xf32, #tpu.memory_space<vmem>>, %arg8: memref<1x16xf32, #tpu.memory_space<vmem>>, %arg9: memref<3x8x16xf32, #tpu.memory_space<vmem>>, %arg10: memref<1x4x8x16xf32, #tpu.memory_space<vmem>>, %arg11: memref<1x4x8x16xf32, #tpu.memory_space<vmem>>, %arg12: memref<1x4x8x16xf32, #tpu.memory_space<vmem>>, %arg13: memref<8x64xf32, #tpu.memory_space<vmem>>) attributes {dimension_semantics = [#tpu.dimension_semantics<parallel>, #tpu.dimension_semantics<parallel>], iteration_bounds = array<i64: 2, 1>, scalar_prefetch = 0 : i64, scratch_operands = 1 : i64, tpu.core_type = #tpu.core_type<tc>, window_params = [{transform_indices = @transform_0, window_bounds = array<i64: 1, 8, 32>}, {pipeline_mode = #tpu.pipeline_mode<synchronous>, transform_indices = @transform_1, window_bounds = array<i64: 1, 32>}, {pipeline_mode = #tpu.pipeline_mode<synchronous>, transform_indices = @transform_2, window_bounds = array<i64: 32, 64>}, {pipeline_mode = #tpu.pipeline_mode<synchronous>, transform_indices = @transform_3, window_bounds = array<i64: 32, 64>}, {pipeline_mode = #tpu.pipeline_mode<synchronous>, transform_indices = @transform_4, window_bounds = array<i64: 32, 64>}, {pipeline_mode = #tpu.pipeline_mode<synchronous>, transform_indices = @transform_5, window_bounds = array<i64: 1, 16>}, {pipeline_mode = #tpu.pipeline_mode<synchronous>, transform_indices = @transform_6, window_bounds = array<i64: 1, 16>}, {transform_indices = @transform_7, window_bounds = array<i64: 3, 8, 16>}, {transform_indices = @transform_8, window_bounds = array<i64: 1, 4, 8, 16>}, {transform_indices = @transform_9, window_bounds = array<i64: 1, 4, 8, 16>}, {transform_indices = @transform_10, window_bounds = array<i64: 1, 4, 8, 16>}]} {
    %c0 = arith.constant 0 : index
    %c0_0 = arith.constant 0 : index
    %c0_1 = arith.constant 0 : index
    %0 = vector.load %arg2[%c0, %c0_0, %c0_1] : memref<1x8x32xf32, #tpu.memory_space<vmem>>, vector<1x8x32xf32>
    %1 = vector.shape_cast %0 : vector<1x8x32xf32> to vector<8x32xf32>
    %cst = arith.constant dense<0.000000e+00> : vector<8xf32>
    %2 = vector.multi_reduction <add>, %1, %cst [1] : vector<8x32xf32> to vector<8xf32>
    %3 = vector.shape_cast %2 : vector<8xf32> to vector<8x1xf32>
    %cst_2 = arith.constant 3.200000e+01 : f32
    %4 = vector.broadcast %cst_2 : f32 to vector<8x1xf32>
    %5 = arith.divf %3, %4 : vector<8x1xf32>
    %6 = vector.broadcast %5 : vector<8x1xf32> to vector<8x32xf32>
    %7 = arith.subf %1, %6 : vector<8x32xf32>
    %8 = arith.mulf %7, %7 : vector<8x32xf32>
    %cst_3 = arith.constant dense<0.000000e+00> : vector<8xf32>
    %9 = vector.multi_reduction <add>, %8, %cst_3 [1] : vector<8x32xf32> to vector<8xf32>
    %10 = vector.shape_cast %9 : vector<8xf32> to vector<8x1xf32>
    %cst_4 = arith.constant 3.200000e+01 : f32
    %11 = vector.broadcast %cst_4 : f32 to vector<8x1xf32>
    %12 = arith.divf %10, %11 : vector<8x1xf32>
    %13 = vector.broadcast %5 : vector<8x1xf32> to vector<8x32xf32>
    %14 = arith.subf %1, %13 : vector<8x32xf32>
    %cst_5 = arith.constant 9.99999974E-6 : f32
    %15 = vector.broadcast %cst_5 : f32 to vector<8x1xf32>
    %16 = arith.addf %12, %15 : vector<8x1xf32>
    %17 = math.rsqrt %16 : vector<8x1xf32>
    %18 = vector.broadcast %17 : vector<8x1xf32> to vector<8x32xf32>
    %19 = arith.mulf %14, %18 : vector<8x32xf32>
    %c0_6 = arith.constant 0 : index
    %c0_7 = arith.constant 0 : index
    %20 = vector.load %arg3[%c0_6, %c0_7] : memref<1x32xf32, #tpu.memory_space<vmem>>, vector<1x32xf32>
    %21 = vector.broadcast %20 : vector<1x32xf32> to vector<8x32xf32>
    %22 = arith.mulf %19, %21 : vector<8x32xf32>
    %c0_8 = arith.constant 0 : index
    %c0_9 = arith.constant 0 : index
    %c0_10 = arith.constant 0 : index
    %23 = vector.load %arg9[%c0_8, %c0_9, %c0_10] : memref<3x8x16xf32, #tpu.memory_space<vmem>>, vector<1x8x16xf32>
    %24 = vector.shape_cast %23 : vector<1x8x16xf32> to vector<8x16xf32>
    %c1 = arith.constant 1 : index
    %c0_11 = arith.constant 0 : index
    %c0_12 = arith.constant 0 : index
    %25 = vector.load %arg9[%c1, %c0_11, %c0_12] : memref<3x8x16xf32, #tpu.memory_space<vmem>>, vector<1x8x16xf32>
    %26 = vector.shape_cast %25 : vector<1x8x16xf32> to vector<8x16xf32>
    %c2 = arith.constant 2 : index
    %c0_13 = arith.constant 0 : index
    %c0_14 = arith.constant 0 : index
    %27 = vector.load %arg9[%c2, %c0_13, %c0_14] : memref<3x8x16xf32, #tpu.memory_space<vmem>>, vector<1x8x16xf32>
    %28 = vector.shape_cast %27 : vector<1x8x16xf32> to vector<8x16xf32>
    %c0_15 = arith.constant 0 : index
    %c0_16 = arith.constant 0 : index
    %29 = vector.load %arg7[%c0_15, %c0_16] : memref<1x16xf32, #tpu.memory_space<vmem>>, vector<1x16xf32>
    %cst_17 = arith.constant 8.000000e+00 : f32
    %30 = vector.broadcast %cst_17 : f32 to vector<1x16xf32>
    %31 = arith.mulf %29, %30 : vector<1x16xf32>
    %c0_18 = arith.constant 0 : index
    %c0_19 = arith.constant 0 : index
    %32 = vector.load %arg8[%c0_18, %c0_19] : memref<1x16xf32, #tpu.memory_space<vmem>>, vector<1x16xf32>
    %c0_20 = arith.constant 0 : index
    %c0_21 = arith.constant 0 : index
    %33 = vector.load %arg4[%c0_20, %c0_21] : memref<32x64xf32, #tpu.memory_space<vmem>>, vector<32x64xf32>
    %cst_22 = arith.constant dense<0.000000e+00> : vector<8x64xf32>
    %34 = tpu.matmul %22, %33, %cst_22 {dimension_numbers = #tpu.dot_dimension_numbers<[1], [0], [0], [1], [0, 0, 1, 1], [], []>} : vector<8x32xf32>, vector<32x64xf32>, vector<8x64xf32> -> vector<8x64xf32>
    %c0_23 = arith.constant 0 : index
    %c0_24 = arith.constant 0 : index
    %35 = vector.load %arg13[%c0_23, %c0_24] : memref<8x64xf32, #tpu.memory_space<vmem>>, vector<8x64xf32>
    tpu.vector_store %arg13[%c0_23, %c0_24], %34 {strides = array<i32>} : memref<8x64xf32, #tpu.memory_space<vmem>>, vector<8x64xf32>,
    %c0_25 = arith.constant 0 : index
    %c0_26 = arith.constant 0 : index
    %36 = vector.load %arg13[%c0_25, %c0_26] : memref<8x64xf32, #tpu.memory_space<vmem>>, vector<8x16xf32>
    %37 = arith.mulf %36, %24 : vector<8x16xf32>
    %38 = vector.extract_strided_slice %36 {offsets = [0, 15], sizes = [8, 1], strides = [1, 1]} : vector<8x16xf32> to vector<8x1xf32>
    %39 = vector.extract_strided_slice %36 {offsets = [0, 0], sizes = [8, 15], strides = [1, 1]} : vector<8x16xf32> to vector<8x15xf32>
    %40 = tpu.concatenate %38, %39 in 1 : vector<8x1xf32>, vector<8x15xf32> -> vector<8x16xf32>
    %41 = arith.mulf %40, %26 : vector<8x16xf32>
    %42 = arith.addf %37, %41 : vector<8x16xf32>
    %43 = vector.extract_strided_slice %36 {offsets = [0, 1], sizes = [8, 15], strides = [1, 1]} : vector<8x16xf32> to vector<8x15xf32>
    %44 = vector.extract_strided_slice %36 {offsets = [0, 0], sizes = [8, 1], strides = [1, 1]} : vector<8x16xf32> to vector<8x1xf32>
    %45 = tpu.concatenate %43, %44 in 1 : vector<8x15xf32>, vector<8x1xf32> -> vector<8x16xf32>
    %46 = arith.mulf %45, %28 : vector<8x16xf32>
    %47 = arith.addf %42, %46 : vector<8x16xf32>
    %48 = arith.mulf %47, %47 : vector<8x16xf32>
    %cst_27 = arith.constant dense<0.000000e+00> : vector<8xf32>
    %49 = vector.multi_reduction <add>, %48, %cst_27 [1] : vector<8x16xf32> to vector<8xf32>
    %50 = vector.shape_cast %49 : vector<8xf32> to vector<8x1xf32>
    %cst_28 = arith.constant 1.000000e-24 : f32
    %51 = vector.broadcast %cst_28 : f32 to vector<8x1xf32>
    %52 = arith.maximumf %50, %51 : vector<8x1xf32>
    %53 = math.rsqrt %52 : vector<8x1xf32>
    %54 = vector.broadcast %53 : vector<8x1xf32> to vector<8x16xf32>
    %55 = arith.mulf %47, %54 : vector<8x16xf32>
    %56 = vector.broadcast %31 : vector<1x16xf32> to vector<8x16xf32>
    %57 = arith.mulf %55, %56 : vector<8x16xf32>
    %c0_29 = arith.constant 0 : index
    %c0_30 = arith.constant 0 : index
    %c0_31 = arith.constant 0 : index
    %c0_32 = arith.constant 0 : index
    %58 = vector.load %arg10[%c0_29, %c0_30, %c0_31, %c0_32] : memref<1x4x8x16xf32, #tpu.memory_space<vmem>>, vector<1x1x8x16xf32>
    %59 = vector.shape_cast %58 : vector<1x1x8x16xf32> to vector<8x16xf32>
    %60 = vector.shape_cast %57 : vector<8x16xf32> to vector<1x1x8x16xf32>
    tpu.vector_store %arg10[%c0_29, %c0_30, %c0_31, %c0_32], %60 {strides = array<i32>} : memref<1x4x8x16xf32, #tpu.memory_space<vmem>>, vector<1x1x8x16xf32>,
    %c0_33 = arith.constant 0 : index
    %c16 = arith.constant 16 : index
    %61 = vector.load %arg13[%c0_33, %c16] : memref<8x64xf32, #tpu.memory_space<vmem>>, vector<8x16xf32>
    %62 = arith.mulf %61, %24 : vector<8x16xf32>
    %63 = vector.extract_strided_slice %61 {offsets = [0, 15], sizes = [8, 1], strides = [1, 1]} : vector<8x16xf32> to vector<8x1xf32>
    %64 = vector.extract_strided_slice %61 {offsets = [0, 0], sizes = [8, 15], strides = [1, 1]} : vector<8x16xf32> to vector<8x15xf32>
    %65 = tpu.concatenate %63, %64 in 1 : vector<8x1xf32>, vector<8x15xf32> -> vector<8x16xf32>
    %66 = arith.mulf %65, %26 : vector<8x16xf32>
    %67 = arith.addf %62, %66 : vector<8x16xf32>
    %68 = vector.extract_strided_slice %61 {offsets = [0, 1], sizes = [8, 15], strides = [1, 1]} : vector<8x16xf32> to vector<8x15xf32>
    %69 = vector.extract_strided_slice %61 {offsets = [0, 0], sizes = [8, 1], strides = [1, 1]} : vector<8x16xf32> to vector<8x1xf32>
    %70 = tpu.concatenate %68, %69 in 1 : vector<8x15xf32>, vector<8x1xf32> -> vector<8x16xf32>
    %71 = arith.mulf %70, %28 : vector<8x16xf32>
    %72 = arith.addf %67, %71 : vector<8x16xf32>
    %73 = arith.mulf %72, %72 : vector<8x16xf32>
    %cst_34 = arith.constant dense<0.000000e+00> : vector<8xf32>
    %74 = vector.multi_reduction <add>, %73, %cst_34 [1] : vector<8x16xf32> to vector<8xf32>
    %75 = vector.shape_cast %74 : vector<8xf32> to vector<8x1xf32>
    %cst_35 = arith.constant 1.000000e-24 : f32
    %76 = vector.broadcast %cst_35 : f32 to vector<8x1xf32>
    %77 = arith.maximumf %75, %76 : vector<8x1xf32>
    %78 = math.rsqrt %77 : vector<8x1xf32>
    %79 = vector.broadcast %78 : vector<8x1xf32> to vector<8x16xf32>
    %80 = arith.mulf %72, %79 : vector<8x16xf32>
    %81 = vector.broadcast %31 : vector<1x16xf32> to vector<8x16xf32>
    %82 = arith.mulf %80, %81 : vector<8x16xf32>
    %c0_36 = arith.constant 0 : index
    %c1_37 = arith.constant 1 : index
    %c0_38 = arith.constant 0 : index
    %c0_39 = arith.constant 0 : index
    %83 = vector.load %arg10[%c0_36, %c1_37, %c0_38, %c0_39] : memref<1x4x8x16xf32, #tpu.memory_space<vmem>>, vector<1x1x8x16xf32>
    %84 = vector.shape_cast %83 : vector<1x1x8x16xf32> to vector<8x16xf32>
    %85 = vector.shape_cast %82 : vector<8x16xf32> to vector<1x1x8x16xf32>
    tpu.vector_store %arg10[%c0_36, %c1_37, %c0_38, %c0_39], %85 {strides = array<i32>} : memref<1x4x8x16xf32, #tpu.memory_space<vmem>>, vector<1x1x8x16xf32>,
    %c0_40 = arith.constant 0 : index
    %c32 = arith.constant 32 : index
    %86 = vector.load %arg13[%c0_40, %c32] : memref<8x64xf32, #tpu.memory_space<vmem>>, vector<8x16xf32>
    %87 = arith.mulf %86, %24 : vector<8x16xf32>
    %88 = vector.extract_strided_slice %86 {offsets = [0, 15], sizes = [8, 1], strides = [1, 1]} : vector<8x16xf32> to vector<8x1xf32>
    %89 = vector.extract_strided_slice %86 {offsets = [0, 0], sizes = [8, 15], strides = [1, 1]} : vector<8x16xf32> to vector<8x15xf32>
    %90 = tpu.concatenate %88, %89 in 1 : vector<8x1xf32>, vector<8x15xf32> -> vector<8x16xf32>
    %91 = arith.mulf %90, %26 : vector<8x16xf32>
    %92 = arith.addf %87, %91 : vector<8x16xf32>
    %93 = vector.extract_strided_slice %86 {offsets = [0, 1], sizes = [8, 15], strides = [1, 1]} : vector<8x16xf32> to vector<8x15xf32>
    %94 = vector.extract_strided_slice %86 {offsets = [0, 0], sizes = [8, 1], strides = [1, 1]} : vector<8x16xf32> to vector<8x1xf32>
    %95 = tpu.concatenate %93, %94 in 1 : vector<8x15xf32>, vector<8x1xf32> -> vector<8x16xf32>
    %96 = arith.mulf %95, %28 : vector<8x16xf32>
    %97 = arith.addf %92, %96 : vector<8x16xf32>
    %98 = arith.mulf %97, %97 : vector<8x16xf32>
    %cst_41 = arith.constant dense<0.000000e+00> : vector<8xf32>
    %99 = vector.multi_reduction <add>, %98, %cst_41 [1] : vector<8x16xf32> to vector<8xf32>
    %100 = vector.shape_cast %99 : vector<8xf32> to vector<8x1xf32>
    %cst_42 = arith.constant 1.000000e-24 : f32
    %101 = vector.broadcast %cst_42 : f32 to vector<8x1xf32>
    %102 = arith.maximumf %100, %101 : vector<8x1xf32>
    %103 = math.rsqrt %102 : vector<8x1xf32>
    %104 = vector.broadcast %103 : vector<8x1xf32> to vector<8x16xf32>
    %105 = arith.mulf %97, %104 : vector<8x16xf32>
    %106 = vector.broadcast %31 : vector<1x16xf32> to vector<8x16xf32>
    %107 = arith.mulf %105, %106 : vector<8x16xf32>
    %c0_43 = arith.constant 0 : index
    %c2_44 = arith.constant 2 : index
    %c0_45 = arith.constant 0 : index
    %c0_46 = arith.constant 0 : index
    %108 = vector.load %arg10[%c0_43, %c2_44, %c0_45, %c0_46] : memref<1x4x8x16xf32, #tpu.memory_space<vmem>>, vector<1x1x8x16xf32>
    %109 = vector.shape_cast %108 : vector<1x1x8x16xf32> to vector<8x16xf32>
    %110 = vector.shape_cast %107 : vector<8x16xf32> to vector<1x1x8x16xf32>
    tpu.vector_store %arg10[%c0_43, %c2_44, %c0_45, %c0_46], %110 {strides = array<i32>} : memref<1x4x8x16xf32, #tpu.memory_space<vmem>>, vector<1x1x8x16xf32>,
    %c0_47 = arith.constant 0 : index
    %c48 = arith.constant 48 : index
    %111 = vector.load %arg13[%c0_47, %c48] : memref<8x64xf32, #tpu.memory_space<vmem>>, vector<8x16xf32>
    %112 = arith.mulf %111, %24 : vector<8x16xf32>
    %113 = vector.extract_strided_slice %111 {offsets = [0, 15], sizes = [8, 1], strides = [1, 1]} : vector<8x16xf32> to vector<8x1xf32>
    %114 = vector.extract_strided_slice %111 {offsets = [0, 0], sizes = [8, 15], strides = [1, 1]} : vector<8x16xf32> to vector<8x15xf32>
    %115 = tpu.concatenate %113, %114 in 1 : vector<8x1xf32>, vector<8x15xf32> -> vector<8x16xf32>
    %116 = arith.mulf %115, %26 : vector<8x16xf32>
    %117 = arith.addf %112, %116 : vector<8x16xf32>
    %118 = vector.extract_strided_slice %111 {offsets = [0, 1], sizes = [8, 15], strides = [1, 1]} : vector<8x16xf32> to vector<8x15xf32>
    %119 = vector.extract_strided_slice %111 {offsets = [0, 0], sizes = [8, 1], strides = [1, 1]} : vector<8x16xf32> to vector<8x1xf32>
    %120 = tpu.concatenate %118, %119 in 1 : vector<8x15xf32>, vector<8x1xf32> -> vector<8x16xf32>
    %121 = arith.mulf %120, %28 : vector<8x16xf32>
    %122 = arith.addf %117, %121 : vector<8x16xf32>
    %123 = arith.mulf %122, %122 : vector<8x16xf32>
    %cst_48 = arith.constant dense<0.000000e+00> : vector<8xf32>
    %124 = vector.multi_reduction <add>, %123, %cst_48 [1] : vector<8x16xf32> to vector<8xf32>
    %125 = vector.shape_cast %124 : vector<8xf32> to vector<8x1xf32>
    %cst_49 = arith.constant 1.000000e-24 : f32
    %126 = vector.broadcast %cst_49 : f32 to vector<8x1xf32>
    %127 = arith.maximumf %125, %126 : vector<8x1xf32>
    %128 = math.rsqrt %127 : vector<8x1xf32>
    %129 = vector.broadcast %128 : vector<8x1xf32> to vector<8x16xf32>
    %130 = arith.mulf %122, %129 : vector<8x16xf32>
    %131 = vector.broadcast %31 : vector<1x16xf32> to vector<8x16xf32>
    %132 = arith.mulf %130, %131 : vector<8x16xf32>
    %c0_50 = arith.constant 0 : index
    %c3 = arith.constant 3 : index
    %c0_51 = arith.constant 0 : index
    %c0_52 = arith.constant 0 : index
    %133 = vector.load %arg10[%c0_50, %c3, %c0_51, %c0_52] : memref<1x4x8x16xf32, #tpu.memory_space<vmem>>, vector<1x1x8x16xf32>
    %134 = vector.shape_cast %133 : vector<1x1x8x16xf32> to vector<8x16xf32>
    %135 = vector.shape_cast %132 : vector<8x16xf32> to vector<1x1x8x16xf32>
    tpu.vector_store %arg10[%c0_50, %c3, %c0_51, %c0_52], %135 {strides = array<i32>} : memref<1x4x8x16xf32, #tpu.memory_space<vmem>>, vector<1x1x8x16xf32>,
    %c0_53 = arith.constant 0 : index
    %c0_54 = arith.constant 0 : index
    %136 = vector.load %arg5[%c0_53, %c0_54] : memref<32x64xf32, #tpu.memory_space<vmem>>, vector<32x64xf32>
    %cst_55 = arith.constant dense<0.000000e+00> : vector<8x64xf32>
    %137 = tpu.matmul %22, %136, %cst_55 {dimension_numbers = #tpu.dot_dimension_numbers<[1], [0], [0], [1], [0, 0, 1, 1], [], []>} : vector<8x32xf32>, vector<32x64xf32>, vector<8x64xf32> -> vector<8x64xf32>
    %c0_56 = arith.constant 0 : index
    %c0_57 = arith.constant 0 : index
    %138 = vector.load %arg13[%c0_56, %c0_57] : memref<8x64xf32, #tpu.memory_space<vmem>>, vector<8x64xf32>
    tpu.vector_store %arg13[%c0_56, %c0_57], %137 {strides = array<i32>} : memref<8x64xf32, #tpu.memory_space<vmem>>, vector<8x64xf32>,
    %c0_58 = arith.constant 0 : index
    %c0_59 = arith.constant 0 : index
    %139 = vector.load %arg13[%c0_58, %c0_59] : memref<8x64xf32, #tpu.memory_space<vmem>>, vector<8x16xf32>
    %140 = arith.mulf %139, %24 : vector<8x16xf32>
    %141 = vector.extract_strided_slice %139 {offsets = [0, 15], sizes = [8, 1], strides = [1, 1]} : vector<8x16xf32> to vector<8x1xf32>
    %142 = vector.extract_strided_slice %139 {offsets = [0, 0], sizes = [8, 15], strides = [1, 1]} : vector<8x16xf32> to vector<8x15xf32>
    %143 = tpu.concatenate %141, %142 in 1 : vector<8x1xf32>, vector<8x15xf32> -> vector<8x16xf32>
    %144 = arith.mulf %143, %26 : vector<8x16xf32>
    %145 = arith.addf %140, %144 : vector<8x16xf32>
    %146 = vector.extract_strided_slice %139 {offsets = [0, 1], sizes = [8, 15], strides = [1, 1]} : vector<8x16xf32> to vector<8x15xf32>
    %147 = vector.extract_strided_slice %139 {offsets = [0, 0], sizes = [8, 1], strides = [1, 1]} : vector<8x16xf32> to vector<8x1xf32>
    %148 = tpu.concatenate %146, %147 in 1 : vector<8x15xf32>, vector<8x1xf32> -> vector<8x16xf32>
    %149 = arith.mulf %148, %28 : vector<8x16xf32>
    %150 = arith.addf %145, %149 : vector<8x16xf32>
    %151 = arith.mulf %150, %150 : vector<8x16xf32>
    %cst_60 = arith.constant dense<0.000000e+00> : vector<8xf32>
    %152 = vector.multi_reduction <add>, %151, %cst_60 [1] : vector<8x16xf32> to vector<8xf32>
    %153 = vector.shape_cast %152 : vector<8xf32> to vector<8x1xf32>
    %cst_61 = arith.constant 1.000000e-24 : f32
    %154 = vector.broadcast %cst_61 : f32 to vector<8x1xf32>
    %155 = arith.maximumf %153, %154 : vector<8x1xf32>
    %156 = math.rsqrt %155 : vector<8x1xf32>
    %157 = vector.broadcast %156 : vector<8x1xf32> to vector<8x16xf32>
    %158 = arith.mulf %150, %157 : vector<8x16xf32>
    %159 = vector.broadcast %32 : vector<1x16xf32> to vector<8x16xf32>
    %160 = arith.mulf %158, %159 : vector<8x16xf32>
    %c0_62 = arith.constant 0 : index
    %c0_63 = arith.constant 0 : index
    %c0_64 = arith.constant 0 : index
    %c0_65 = arith.constant 0 : index
    %161 = vector.load %arg11[%c0_62, %c0_63, %c0_64, %c0_65] : memref<1x4x8x16xf32, #tpu.memory_space<vmem>>, vector<1x1x8x16xf32>
    %162 = vector.shape_cast %161 : vector<1x1x8x16xf32> to vector<8x16xf32>
    %163 = vector.shape_cast %160 : vector<8x16xf32> to vector<1x1x8x16xf32>
    tpu.vector_store %arg11[%c0_62, %c0_63, %c0_64, %c0_65], %163 {strides = array<i32>} : memref<1x4x8x16xf32, #tpu.memory_space<vmem>>, vector<1x1x8x16xf32>,
    %c0_66 = arith.constant 0 : index
    %c16_67 = arith.constant 16 : index
    %164 = vector.load %arg13[%c0_66, %c16_67] : memref<8x64xf32, #tpu.memory_space<vmem>>, vector<8x16xf32>
    %165 = arith.mulf %164, %24 : vector<8x16xf32>
    %166 = vector.extract_strided_slice %164 {offsets = [0, 15], sizes = [8, 1], strides = [1, 1]} : vector<8x16xf32> to vector<8x1xf32>
    %167 = vector.extract_strided_slice %164 {offsets = [0, 0], sizes = [8, 15], strides = [1, 1]} : vector<8x16xf32> to vector<8x15xf32>
    %168 = tpu.concatenate %166, %167 in 1 : vector<8x1xf32>, vector<8x15xf32> -> vector<8x16xf32>
    %169 = arith.mulf %168, %26 : vector<8x16xf32>
    %170 = arith.addf %165, %169 : vector<8x16xf32>
    %171 = vector.extract_strided_slice %164 {offsets = [0, 1], sizes = [8, 15], strides = [1, 1]} : vector<8x16xf32> to vector<8x15xf32>
    %172 = vector.extract_strided_slice %164 {offsets = [0, 0], sizes = [8, 1], strides = [1, 1]} : vector<8x16xf32> to vector<8x1xf32>
    %173 = tpu.concatenate %171, %172 in 1 : vector<8x15xf32>, vector<8x1xf32> -> vector<8x16xf32>
    %174 = arith.mulf %173, %28 : vector<8x16xf32>
    %175 = arith.addf %170, %174 : vector<8x16xf32>
    %176 = arith.mulf %175, %175 : vector<8x16xf32>
    %cst_68 = arith.constant dense<0.000000e+00> : vector<8xf32>
    %177 = vector.multi_reduction <add>, %176, %cst_68 [1] : vector<8x16xf32> to vector<8xf32>
    %178 = vector.shape_cast %177 : vector<8xf32> to vector<8x1xf32>
    %cst_69 = arith.constant 1.000000e-24 : f32
    %179 = vector.broadcast %cst_69 : f32 to vector<8x1xf32>
    %180 = arith.maximumf %178, %179 : vector<8x1xf32>
    %181 = math.rsqrt %180 : vector<8x1xf32>
    %182 = vector.broadcast %181 : vector<8x1xf32> to vector<8x16xf32>
    %183 = arith.mulf %175, %182 : vector<8x16xf32>
    %184 = vector.broadcast %32 : vector<1x16xf32> to vector<8x16xf32>
    %185 = arith.mulf %183, %184 : vector<8x16xf32>
    %c0_70 = arith.constant 0 : index
    %c1_71 = arith.constant 1 : index
    %c0_72 = arith.constant 0 : index
    %c0_73 = arith.constant 0 : index
    %186 = vector.load %arg11[%c0_70, %c1_71, %c0_72, %c0_73] : memref<1x4x8x16xf32, #tpu.memory_space<vmem>>, vector<1x1x8x16xf32>
    %187 = vector.shape_cast %186 : vector<1x1x8x16xf32> to vector<8x16xf32>
    %188 = vector.shape_cast %185 : vector<8x16xf32> to vector<1x1x8x16xf32>
    tpu.vector_store %arg11[%c0_70, %c1_71, %c0_72, %c0_73], %188 {strides = array<i32>} : memref<1x4x8x16xf32, #tpu.memory_space<vmem>>, vector<1x1x8x16xf32>,
    %c0_74 = arith.constant 0 : index
    %c32_75 = arith.constant 32 : index
    %189 = vector.load %arg13[%c0_74, %c32_75] : memref<8x64xf32, #tpu.memory_space<vmem>>, vector<8x16xf32>
    %190 = arith.mulf %189, %24 : vector<8x16xf32>
    %191 = vector.extract_strided_slice %189 {offsets = [0, 15], sizes = [8, 1], strides = [1, 1]} : vector<8x16xf32> to vector<8x1xf32>
    %192 = vector.extract_strided_slice %189 {offsets = [0, 0], sizes = [8, 15], strides = [1, 1]} : vector<8x16xf32> to vector<8x15xf32>
    %193 = tpu.concatenate %191, %192 in 1 : vector<8x1xf32>, vector<8x15xf32> -> vector<8x16xf32>
    %194 = arith.mulf %193, %26 : vector<8x16xf32>
    %195 = arith.addf %190, %194 : vector<8x16xf32>
    %196 = vector.extract_strided_slice %189 {offsets = [0, 1], sizes = [8, 15], strides = [1, 1]} : vector<8x16xf32> to vector<8x15xf32>
    %197 = vector.extract_strided_slice %189 {offsets = [0, 0], sizes = [8, 1], strides = [1, 1]} : vector<8x16xf32> to vector<8x1xf32>
    %198 = tpu.concatenate %196, %197 in 1 : vector<8x15xf32>, vector<8x1xf32> -> vector<8x16xf32>
    %199 = arith.mulf %198, %28 : vector<8x16xf32>
    %200 = arith.addf %195, %199 : vector<8x16xf32>
    %201 = arith.mulf %200, %200 : vector<8x16xf32>
    %cst_76 = arith.constant dense<0.000000e+00> : vector<8xf32>
    %202 = vector.multi_reduction <add>, %201, %cst_76 [1] : vector<8x16xf32> to vector<8xf32>
    %203 = vector.shape_cast %202 : vector<8xf32> to vector<8x1xf32>
    %cst_77 = arith.constant 1.000000e-24 : f32
    %204 = vector.broadcast %cst_77 : f32 to vector<8x1xf32>
    %205 = arith.maximumf %203, %204 : vector<8x1xf32>
    %206 = math.rsqrt %205 : vector<8x1xf32>
    %207 = vector.broadcast %206 : vector<8x1xf32> to vector<8x16xf32>
    %208 = arith.mulf %200, %207 : vector<8x16xf32>
    %209 = vector.broadcast %32 : vector<1x16xf32> to vector<8x16xf32>
    %210 = arith.mulf %208, %209 : vector<8x16xf32>
    %c0_78 = arith.constant 0 : index
    %c2_79 = arith.constant 2 : index
    %c0_80 = arith.constant 0 : index
    %c0_81 = arith.constant 0 : index
    %211 = vector.load %arg11[%c0_78, %c2_79, %c0_80, %c0_81] : memref<1x4x8x16xf32, #tpu.memory_space<vmem>>, vector<1x1x8x16xf32>
    %212 = vector.shape_cast %211 : vector<1x1x8x16xf32> to vector<8x16xf32>
    %213 = vector.shape_cast %210 : vector<8x16xf32> to vector<1x1x8x16xf32>
    tpu.vector_store %arg11[%c0_78, %c2_79, %c0_80, %c0_81], %213 {strides = array<i32>} : memref<1x4x8x16xf32, #tpu.memory_space<vmem>>, vector<1x1x8x16xf32>,
    %c0_82 = arith.constant 0 : index
    %c48_83 = arith.constant 48 : index
    %214 = vector.load %arg13[%c0_82, %c48_83] : memref<8x64xf32, #tpu.memory_space<vmem>>, vector<8x16xf32>
    %215 = arith.mulf %214, %24 : vector<8x16xf32>
    %216 = vector.extract_strided_slice %214 {offsets = [0, 15], sizes = [8, 1], strides = [1, 1]} : vector<8x16xf32> to vector<8x1xf32>
    %217 = vector.extract_strided_slice %214 {offsets = [0, 0], sizes = [8, 15], strides = [1, 1]} : vector<8x16xf32> to vector<8x15xf32>
    %218 = tpu.concatenate %216, %217 in 1 : vector<8x1xf32>, vector<8x15xf32> -> vector<8x16xf32>
    %219 = arith.mulf %218, %26 : vector<8x16xf32>
    %220 = arith.addf %215, %219 : vector<8x16xf32>
    %221 = vector.extract_strided_slice %214 {offsets = [0, 1], sizes = [8, 15], strides = [1, 1]} : vector<8x16xf32> to vector<8x15xf32>
    %222 = vector.extract_strided_slice %214 {offsets = [0, 0], sizes = [8, 1], strides = [1, 1]} : vector<8x16xf32> to vector<8x1xf32>
    %223 = tpu.concatenate %221, %222 in 1 : vector<8x15xf32>, vector<8x1xf32> -> vector<8x16xf32>
    %224 = arith.mulf %223, %28 : vector<8x16xf32>
    %225 = arith.addf %220, %224 : vector<8x16xf32>
    %226 = arith.mulf %225, %225 : vector<8x16xf32>
    %cst_84 = arith.constant dense<0.000000e+00> : vector<8xf32>
    %227 = vector.multi_reduction <add>, %226, %cst_84 [1] : vector<8x16xf32> to vector<8xf32>
    %228 = vector.shape_cast %227 : vector<8xf32> to vector<8x1xf32>
    %cst_85 = arith.constant 1.000000e-24 : f32
    %229 = vector.broadcast %cst_85 : f32 to vector<8x1xf32>
    %230 = arith.maximumf %228, %229 : vector<8x1xf32>
    %231 = math.rsqrt %230 : vector<8x1xf32>
    %232 = vector.broadcast %231 : vector<8x1xf32> to vector<8x16xf32>
    %233 = arith.mulf %225, %232 : vector<8x16xf32>
    %234 = vector.broadcast %32 : vector<1x16xf32> to vector<8x16xf32>
    %235 = arith.mulf %233, %234 : vector<8x16xf32>
    %c0_86 = arith.constant 0 : index
    %c3_87 = arith.constant 3 : index
    %c0_88 = arith.constant 0 : index
    %c0_89 = arith.constant 0 : index
    %236 = vector.load %arg11[%c0_86, %c3_87, %c0_88, %c0_89] : memref<1x4x8x16xf32, #tpu.memory_space<vmem>>, vector<1x1x8x16xf32>
    %237 = vector.shape_cast %236 : vector<1x1x8x16xf32> to vector<8x16xf32>
    %238 = vector.shape_cast %235 : vector<8x16xf32> to vector<1x1x8x16xf32>
    tpu.vector_store %arg11[%c0_86, %c3_87, %c0_88, %c0_89], %238 {strides = array<i32>} : memref<1x4x8x16xf32, #tpu.memory_space<vmem>>, vector<1x1x8x16xf32>,
    %c0_90 = arith.constant 0 : index
    %c0_91 = arith.constant 0 : index
    %239 = vector.load %arg6[%c0_90, %c0_91] : memref<32x64xf32, #tpu.memory_space<vmem>>, vector<32x64xf32>
    %cst_92 = arith.constant dense<0.000000e+00> : vector<8x64xf32>
    %240 = tpu.matmul %22, %239, %cst_92 {dimension_numbers = #tpu.dot_dimension_numbers<[1], [0], [0], [1], [0, 0, 1, 1], [], []>} : vector<8x32xf32>, vector<32x64xf32>, vector<8x64xf32> -> vector<8x64xf32>
    %c0_93 = arith.constant 0 : index
    %c0_94 = arith.constant 0 : index
    %241 = vector.load %arg13[%c0_93, %c0_94] : memref<8x64xf32, #tpu.memory_space<vmem>>, vector<8x64xf32>
    tpu.vector_store %arg13[%c0_93, %c0_94], %240 {strides = array<i32>} : memref<8x64xf32, #tpu.memory_space<vmem>>, vector<8x64xf32>,
    %c0_95 = arith.constant 0 : index
    %c0_96 = arith.constant 0 : index
    %242 = vector.load %arg13[%c0_95, %c0_96] : memref<8x64xf32, #tpu.memory_space<vmem>>, vector<8x16xf32>
    %c0_97 = arith.constant 0 : index
    %c0_98 = arith.constant 0 : index
    %c0_99 = arith.constant 0 : index
    %c0_100 = arith.constant 0 : index
    %243 = vector.load %arg12[%c0_97, %c0_98, %c0_99, %c0_100] : memref<1x4x8x16xf32, #tpu.memory_space<vmem>>, vector<1x1x8x16xf32>
    %244 = vector.shape_cast %243 : vector<1x1x8x16xf32> to vector<8x16xf32>
    %245 = vector.shape_cast %242 : vector<8x16xf32> to vector<1x1x8x16xf32>
    tpu.vector_store %arg12[%c0_97, %c0_98, %c0_99, %c0_100], %245 {strides = array<i32>} : memref<1x4x8x16xf32, #tpu.memory_space<vmem>>, vector<1x1x8x16xf32>,
    %c0_101 = arith.constant 0 : index
    %c16_102 = arith.constant 16 : index
    %246 = vector.load %arg13[%c0_101, %c16_102] : memref<8x64xf32, #tpu.memory_space<vmem>>, vector<8x16xf32>
    %c0_103 = arith.constant 0 : index
    %c1_104 = arith.constant 1 : index
    %c0_105 = arith.constant 0 : index
    %c0_106 = arith.constant 0 : index
    %247 = vector.load %arg12[%c0_103, %c1_104, %c0_105, %c0_106] : memref<1x4x8x16xf32, #tpu.memory_space<vmem>>, vector<1x1x8x16xf32>
    %248 = vector.shape_cast %247 : vector<1x1x8x16xf32> to vector<8x16xf32>
    %249 = vector.shape_cast %246 : vector<8x16xf32> to vector<1x1x8x16xf32>
    tpu.vector_store %arg12[%c0_103, %c1_104, %c0_105, %c0_106], %249 {strides = array<i32>} : memref<1x4x8x16xf32, #tpu.memory_space<vmem>>, vector<1x1x8x16xf32>,
    %c0_107 = arith.constant 0 : index
    %c32_108 = arith.constant 32 : index
    %250 = vector.load %arg13[%c0_107, %c32_108] : memref<8x64xf32, #tpu.memory_space<vmem>>, vector<8x16xf32>
    %c0_109 = arith.constant 0 : index
    %c2_110 = arith.constant 2 : index
    %c0_111 = arith.constant 0 : index
    %c0_112 = arith.constant 0 : index
    %251 = vector.load %arg12[%c0_109, %c2_110, %c0_111, %c0_112] : memref<1x4x8x16xf32, #tpu.memory_space<vmem>>, vector<1x1x8x16xf32>
    %252 = vector.shape_cast %251 : vector<1x1x8x16xf32> to vector<8x16xf32>
    %253 = vector.shape_cast %250 : vector<8x16xf32> to vector<1x1x8x16xf32>
    tpu.vector_store %arg12[%c0_109, %c2_110, %c0_111, %c0_112], %253 {strides = array<i32>} : memref<1x4x8x16xf32, #tpu.memory_space<vmem>>, vector<1x1x8x16xf32>,
    %c0_113 = arith.constant 0 : index
    %c48_114 = arith.constant 48 : index
    %254 = vector.load %arg13[%c0_113, %c48_114] : memref<8x64xf32, #tpu.memory_space<vmem>>, vector<8x16xf32>
    %c0_115 = arith.constant 0 : index
    %c3_116 = arith.constant 3 : index
    %c0_117 = arith.constant 0 : index
    %c0_118 = arith.constant 0 : index
    %255 = vector.load %arg12[%c0_115, %c3_116, %c0_117, %c0_118] : memref<1x4x8x16xf32, #tpu.memory_space<vmem>>, vector<1x1x8x16xf32>
    %256 = vector.shape_cast %255 : vector<1x1x8x16xf32> to vector<8x16xf32>
    %257 = vector.shape_cast %254 : vector<8x16xf32> to vector<1x1x8x16xf32>
    tpu.vector_store %arg12[%c0_115, %c3_116, %c0_117, %c0_118], %257 {strides = array<i32>} : memref<1x4x8x16xf32, #tpu.memory_space<vmem>>, vector<1x1x8x16xf32>,
    return
  }
  func.func @transform_0(%arg0: i32, %arg1: i32) -> (i32, i32, i32) {
    %c0_i32 = arith.constant 0 : i32
    %c0_i32_0 = arith.constant 0 : i32
    return %arg0, %arg1, %c0_i32 : i32, i32, i32
  }
  func.func @transform_1(%arg0: i32, %arg1: i32) -> (i32, i32) {
    %c0_i32 = arith.constant 0 : i32
    %c0_i32_0 = arith.constant 0 : i32
    %c0_i32_1 = arith.constant 0 : i32
    return %c0_i32, %c0_i32_0 : i32, i32
  }
  func.func @transform_2(%arg0: i32, %arg1: i32) -> (i32, i32) {
    %c0_i32 = arith.constant 0 : i32
    %c0_i32_0 = arith.constant 0 : i32
    %c0_i32_1 = arith.constant 0 : i32
    return %c0_i32, %c0_i32_0 : i32, i32
  }
  func.func @transform_3(%arg0: i32, %arg1: i32) -> (i32, i32) {
    %c0_i32 = arith.constant 0 : i32
    %c0_i32_0 = arith.constant 0 : i32
    %c0_i32_1 = arith.constant 0 : i32
    return %c0_i32, %c0_i32_0 : i32, i32
  }
  func.func @transform_4(%arg0: i32, %arg1: i32) -> (i32, i32) {
    %c0_i32 = arith.constant 0 : i32
    %c0_i32_0 = arith.constant 0 : i32
    %c0_i32_1 = arith.constant 0 : i32
    return %c0_i32, %c0_i32_0 : i32, i32
  }
  func.func @transform_5(%arg0: i32, %arg1: i32) -> (i32, i32) {
    %c0_i32 = arith.constant 0 : i32
    %c0_i32_0 = arith.constant 0 : i32
    %c0_i32_1 = arith.constant 0 : i32
    return %c0_i32, %c0_i32_0 : i32, i32
  }
  func.func @transform_6(%arg0: i32, %arg1: i32) -> (i32, i32) {
    %c0_i32 = arith.constant 0 : i32
    %c0_i32_0 = arith.constant 0 : i32
    %c0_i32_1 = arith.constant 0 : i32
    return %c0_i32, %c0_i32_0 : i32, i32
  }
  func.func @transform_7(%arg0: i32, %arg1: i32) -> (i32, i32, i32) {
    %c0_i32 = arith.constant 0 : i32
    %c0_i32_0 = arith.constant 0 : i32
    %c0_i32_1 = arith.constant 0 : i32
    return %c0_i32, %arg1, %c0_i32_0 : i32, i32, i32
  }
  func.func @transform_8(%arg0: i32, %arg1: i32) -> (i32, i32, i32, i32) {
    %c0_i32 = arith.constant 0 : i32
    %c0_i32_0 = arith.constant 0 : i32
    %c0_i32_1 = arith.constant 0 : i32
    return %arg0, %c0_i32, %arg1, %c0_i32_0 : i32, i32, i32, i32
  }
  func.func @transform_9(%arg0: i32, %arg1: i32) -> (i32, i32, i32, i32) {
    %c0_i32 = arith.constant 0 : i32
    %c0_i32_0 = arith.constant 0 : i32
    %c0_i32_1 = arith.constant 0 : i32
    return %arg0, %c0_i32, %arg1, %c0_i32_0 : i32, i32, i32, i32
  }
  func.func @transform_10(%arg0: i32, %arg1: i32) -> (i32, i32, i32, i32) {
    %c0_i32 = arith.constant 0 : i32
    %c0_i32_0 = arith.constant 0 : i32
    %c0_i32_1 = arith.constant 0 : i32
    return %arg0, %c0_i32, %arg1, %c0_i32_0 : i32, i32, i32, i32
  }
}

</mosaic_0001>

<llo_original>
// kernel: tpu_custom_call.1
$region0: #{tpu_custom_call.1}
  #allocation0 [shape = 'u32[]', space=smem, size = 0x4, offset = 0x4, fixed_abs, tag = 'smem constant byte address 0x4 - core index']
  #allocation1 [shape = 'u32[72,128]{1,0:T(1,128)}', space=vmem, size = 0x9000, scoped, tag = 'internal scratch']
  #allocation2 [shape = 'f32[8,64]{1,0:T(8,128)}', space=vmem, size = 0x1000, scoped, tag = 'scratch operand']
  %s0 = inlined_call_operand.hbm [shape: f32[2,8,32], index: 0, kind: input, shape index: {}]
  %s1 = inlined_call_operand.hbm [shape: f32[1,32], index: 1, kind: input, shape index: {}]
  %s2 = inlined_call_operand.hbm [shape: f32[32,64], index: 2, kind: input, shape index: {}]
  %s3 = inlined_call_operand.hbm [shape: f32[32,64], index: 3, kind: input, shape index: {}]
  %s4 = inlined_call_operand.hbm [shape: f32[32,64], index: 4, kind: input, shape index: {}]
  %s5 = inlined_call_operand.vmem [shape: f32[1,16], index: 5, kind: input, shape index: {}]
  %s6 = inlined_call_operand.vmem [shape: f32[1,16], index: 6, kind: input, shape index: {}]
  %s7 = inlined_call_operand.hbm [shape: f32[3,8,16], index: 7, kind: input, shape index: {}]
  %s8 = inlined_call_operand.hbm [shape: f32[2,4,8,16], index: 8, kind: output, shape index: {0}]
  %s9 = inlined_call_operand.hbm [shape: f32[2,4,8,16], index: 9, kind: output, shape index: {1}]
  %s10 = inlined_call_operand.hbm [shape: f32[2,4,8,16], index: 10, kind: output, shape index: {2}]
  %11 = xla_tuple %s8, %s9, %s10
  %s12 = sld [smem:[#allocation0]]
  $region105: #{tpu_custom_call.1} parent=0
    _
  %s14 = ssub.s32 1, %s12
  %s15 = scalar_select 0, %s14, %s12
  $region1: #{tpu_custom_call.1} parent=0
    #allocation3 [shape = 'u8[8192]{0}', space=vmem, size = 0x2000, scoped, tag = 'input window, operand 0']
    #allocation4 [shape = 's32[2]{0}', space=sflag, size = 0x8, scoped, tag = 'scoped memory for tpu_custom_call.1']
    #allocation5 [shape = 's32[2]{0}', space=sflag, size = 0x8, scoped, tag = 'scoped memory for tpu_custom_call.1']
    #allocation6 [shape = 'u8[512]{0}', space=vmem, size = 0x400, scoped, tag = 'input window, operand 1, single buffered']
    #allocation7 [shape = 's32[1]{0}', space=sflag, size = 0x4, scoped, tag = 'scoped memory for tpu_custom_call.1']
    #allocation8 [shape = 'u8[16384]{0}', space=vmem, size = 0x4000, scoped, tag = 'input window, operand 2, single buffered']
    #allocation9 [shape = 'u8[16384]{0}', space=vmem, size = 0x4000, scoped, tag = 'input window, operand 3, single buffered']
    #allocation10 [shape = 's32[1]{0}', space=sflag, size = 0x4, scoped, tag = 'scoped memory for tpu_custom_call.1']
    #allocation11 [shape = 'u8[16384]{0}', space=vmem, size = 0x4000, scoped, tag = 'input window, operand 4, single buffered']
    #allocation12 [shape = 'u8[12288]{0}', space=vmem, size = 0x3000, scoped, tag = 'input window, operand 7, single buffered']
    #allocation13 [shape = 's32[1]{0}', space=sflag, size = 0x4, scoped, tag = 'scoped memory for tpu_custom_call.1']
    #allocation14 [shape = 'u8[32768]{0}', space=vmem, size = 0x8000, scoped, tag = 'output window, operand 0']
    #allocation15 [shape = 'u8[32768]{0}', space=vmem, size = 0x8000, scoped, tag = 'output window, operand 1']
    #allocation16 [shape = 's32[2]{0}', space=sflag, size = 0x8, scoped, tag = 'scoped memory for tpu_custom_call.1']
    #allocation17 [shape = 'u8[32768]{0}', space=vmem, size = 0x8000, scoped, tag = 'output window, operand 2']
    %16 = vsyncpa [#allocation4], 0
    %s17 = scalar_lea.sflag [#allocation4], 1
    %18 = vsyncpa %s17, 0
    %19 = vsyncpa [#allocation7], 0
    %20 = vsyncpa [#allocation10], 0
    %21 = vsyncpa [#allocation13], 0
    %22 = vsyncpa [#allocation5], 0
    %s23 = scalar_lea.sflag [#allocation5], 1
    %24 = vsyncpa %s23, 0
    %25 = vsyncpa [#allocation16], 0
    %s26 = scalar_lea.sflag [#allocation16], 1
    %27 = vsyncpa %s26, 0
    loop: start=0, step=1, limit=4
    $region2: #{tpu_custom_call.1} parent=1 // loop_pre_header
      _
    $region3: #{tpu_custom_call.1} parent=1 // loop_header
      %s29 = sphi 0, %s33
      %p30 = scmp.ge.s32.totalorder %s29, 4
      %s36 = sphi 0, %s48
      %s37 = sphi 0, %s44
      %s38 = sphi 0, %s36
      %s39 = sphi 0, %s37
      %s40 = sphi 0, %s38
      %s41 = sphi 0, %s39
      %s53 = sphi 0, %s55
      %s56 = sphi 0, %s53
      %s57 = sphi 0, %s56
      %s73 = sphi 0, %s57
      %s77 = sphi 0, %s77
      %s79 = sphi 0, %s77
      %s80 = sphi 0, %s79
      %s94 = sphi 0, %s80
      %s98 = sphi 0, %s98
      %s100 = sphi 0, %s98
      %s101 = sphi 0, %s100
      %s115 = sphi 0, %s101
      %s119 = sphi 0, %s119
      %s121 = sphi 0, %s119
      %s122 = sphi 0, %s121
      %s136 = sphi 0, %s122
      %s140 = sphi 0, %s140
      %s142 = sphi 0, %s140
      %s143 = sphi 0, %s142
      %s157 = sphi 0, %s143
      %s161 = sphi 0, %s161
      %s163 = sphi 0, %s161
      %s164 = sphi 0, %s163
      %s178 = sphi 0, %s164
      %s182 = sphi 0, %s182
      %s184 = sphi 0, %s182
      %s185 = sphi 0, %s184
      %s199 = sphi 0, %s185
      %s205 = sphi 0, %s207
      %s208 = sphi 0, %s205
      %s209 = sphi 0, %s208
      %s225 = sphi 0, %s209
      %s233 = sphi 0, %s235
      %s236 = sphi 0, %s233
      %s237 = sphi 0, %s236
      %s253 = sphi 0, %s237
      %s261 = sphi 0, %s263
      %s264 = sphi 0, %s261
      %s265 = sphi 0, %s264
      %s281 = sphi 0, %s265
      %s289 = sphi 0, %s291
      %s292 = sphi 0, %s289
      %s293 = sphi 0, %s292
      %s309 = sphi 0, %s293
    $region4: #{tpu_custom_call.1} parent=1 // loop_header_branch
      %32 = sbr.rel (%p30) target = $region8
    $region5: #{tpu_custom_call.1} parent=1 // loop_body
      %s34 = ssub.s32 %s29, 1
      %s35 = ssub.s32 %s29, 2
      %s42 = sadd.s32 1, %s37
      %p43 = scmp.ge.s32.totalorder %s42, 1
      %s44 = scalar_select %p43, 0, %s42
      %s45 = sadd.s32 1, %s36
      %s46 = scalar_select %p43, %s45, %s36
      %p47 = scmp.ge.s32.totalorder %s46, 2
      %s48 = scalar_select %p47, 0, %s46
      %s49 = ssub.s32 %s36, %s48
      %s50 = ssub.s32 %s37, %s44
      %s51 = sor.u32 %s49, %s50
      %p52 = scmp.eq.s32.totalorder %s51, 0
      %s54 = sadd.s32 %s53, 1
      %s55 = scalar_select %p52, %s53, %s54
      %p58 = pneg %p52
      %p59 = scmp.eq.s32.totalorder %s29, 1
      %p60 = por %p58, %p59
      %p61 = scmp.ne.s32.totalorder %s53, %s56
      %p62 = scmp.eq.s32.totalorder %s29, 0
      %p63 = por %p61, %p62
      %p64 = scmp.ne.s32.totalorder %s53, %s56
      %p65 = scmp.eq.s32.totalorder %s34, 1
      %p66 = por %p64, %p65
      %p67 = scmp.ne.s32.totalorder %s56, %s57
      %p68 = scmp.eq.s32.totalorder %s34, 0
      %p69 = por %p67, %p68
      %p70 = scmp.ne.s32.totalorder %s56, %s57
      %p71 = scmp.eq.s32.totalorder %s35, 1
      %p72 = por %p70, %p71
      %p74 = scmp.ne.s32.totalorder %s57, %s73
      %p75 = scmp.eq.s32.totalorder %s35, 0
      %p76 = por %p74, %p75
      %s78 = sadd.s32 %s77, 1
      %p81 = scmp.eq.s32.totalorder %s29, 1
      %p82 = scmp.ne.s32.totalorder %s77, %s79
      %p83 = scmp.eq.s32.totalorder %s29, 0
      %p84 = por %p82, %p83
      %p85 = scmp.ne.s32.totalorder %s77, %s79
      %p86 = scmp.eq.s32.totalorder %s34, 1
      %p87 = por %p85, %p86
      %p88 = scmp.ne.s32.totalorder %s79, %s80
      %p89 = scmp.eq.s32.totalorder %s34, 0
      %p90 = por %p88, %p89
      %p91 = scmp.ne.s32.totalorder %s79, %s80
      %p92 = scmp.eq.s32.totalorder %s35, 1
      %p93 = por %p91, %p92
      %p95 = scmp.ne.s32.totalorder %s80, %s94
      %p96 = scmp.eq.s32.totalorder %s35, 0
      %p97 = por %p95, %p96
      %s99 = sadd.s32 %s98, 1
      %p102 = scmp.eq.s32.totalorder %s29, 1
      %p103 = scmp.ne.s32.totalorder %s98, %s100
      %p104 = scmp.eq.s32.totalorder %s29, 0
      %p105 = por %p103, %p104
      %p106 = scmp.ne.s32.totalorder %s98, %s100
      %p107 = scmp.eq.s32.totalorder %s34, 1
      %p108 = por %p106, %p107
      %p109 = scmp.ne.s32.totalorder %s100, %s101
      %p110 = scmp.eq.s32.totalorder %s34, 0
      %p111 = por %p109, %p110
      %p112 = scmp.ne.s32.totalorder %s100, %s101
      %p113 = scmp.eq.s32.totalorder %s35, 1
      %p114 = por %p112, %p113
      %p116 = scmp.ne.s32.totalorder %s101, %s115
      %p117 = scmp.eq.s32.totalorder %s35, 0
      %p118 = por %p116, %p117
      %s120 = sadd.s32 %s119, 1
      %p123 = scmp.eq.s32.totalorder %s29, 1
      %p124 = scmp.ne.s32.totalorder %s119, %s121
      %p125 = scmp.eq.s32.totalorder %s29, 0
      %p126 = por %p124, %p125
      %p127 = scmp.ne.s32.totalorder %s119, %s121
      %p128 = scmp.eq.s32.totalorder %s34, 1
      %p129 = por %p127, %p128
      %p130 = scmp.ne.s32.totalorder %s121, %s122
      %p131 = scmp.eq.s32.totalorder %s34, 0
      %p132 = por %p130, %p131
      %p133 = scmp.ne.s32.totalorder %s121, %s122
      %p134 = scmp.eq.s32.totalorder %s35, 1
      %p135 = por %p133, %p134
      %p137 = scmp.ne.s32.totalorder %s122, %s136
      %p138 = scmp.eq.s32.totalorder %s35, 0
      %p139 = por %p137, %p138
      %s141 = sadd.s32 %s140, 1
      %p144 = scmp.eq.s32.totalorder %s29, 1
      %p145 = scmp.ne.s32.totalorder %s140, %s142
      %p146 = scmp.eq.s32.totalorder %s29, 0
      %p147 = por %p145, %p146
      %p148 = scmp.ne.s32.totalorder %s140, %s142
      %p149 = scmp.eq.s32.totalorder %s34, 1
      %p150 = por %p148, %p149
      %p151 = scmp.ne.s32.totalorder %s142, %s143
      %p152 = scmp.eq.s32.totalorder %s34, 0
      %p153 = por %p151, %p152
      %p154 = scmp.ne.s32.totalorder %s142, %s143
      %p155 = scmp.eq.s32.totalorder %s35, 1
      %p156 = por %p154, %p155
      %p158 = scmp.ne.s32.totalorder %s143, %s157
      %p159 = scmp.eq.s32.totalorder %s35, 0
      %p160 = por %p158, %p159
      %s162 = sadd.s32 %s161, 1
      %p165 = scmp.eq.s32.totalorder %s29, 1
      %p166 = scmp.ne.s32.totalorder %s161, %s163
      %p167 = scmp.eq.s32.totalorder %s29, 0
      %p168 = por %p166, %p167
      %p169 = scmp.ne.s32.totalorder %s161, %s163
      %p170 = scmp.eq.s32.totalorder %s34, 1
      %p171 = por %p169, %p170
      %p172 = scmp.ne.s32.totalorder %s163, %s164
      %p173 = scmp.eq.s32.totalorder %s34, 0
      %p174 = por %p172, %p173
      %p175 = scmp.ne.s32.totalorder %s163, %s164
      %p176 = scmp.eq.s32.totalorder %s35, 1
      %p177 = por %p175, %p176
      %p179 = scmp.ne.s32.totalorder %s164, %s178
      %p180 = scmp.eq.s32.totalorder %s35, 0
      %p181 = por %p179, %p180
      %s183 = sadd.s32 %s182, 1
      %p186 = scmp.eq.s32.totalorder %s29, 1
      %p187 = scmp.ne.s32.totalorder %s182, %s184
      %p188 = scmp.eq.s32.totalorder %s29, 0
      %p189 = por %p187, %p188
      %p190 = scmp.ne.s32.totalorder %s182, %s184
      %p191 = scmp.eq.s32.totalorder %s34, 1
      %p192 = por %p190, %p191
      %p193 = scmp.ne.s32.totalorder %s184, %s185
      %p194 = scmp.eq.s32.totalorder %s34, 0
      %p195 = por %p193, %p194
      %p196 = scmp.ne.s32.totalorder %s184, %s185
      %p197 = scmp.eq.s32.totalorder %s35, 1
      %p198 = por %p196, %p197
      %p200 = scmp.ne.s32.totalorder %s185, %s199
      %p201 = scmp.eq.s32.totalorder %s35, 0
      %p202 = por %p200, %p201
      %s203 = ssub.s32 %s37, %s44
      %p204 = scmp.eq.s32.totalorder %s203, 0
      %s206 = sadd.s32 %s205, 1
      %s207 = scalar_select %p204, %s205, %s206
      %p210 = pneg %p204
      %p211 = scmp.eq.s32.totalorder %s29, 1
      %p212 = por %p210, %p211
      %p213 = scmp.ne.s32.totalorder %s205, %s208
      %p214 = scmp.eq.s32.totalorder %s29, 0
      %p215 = por %p213, %p214
      %p216 = scmp.ne.s32.totalorder %s205, %s208
      %p217 = scmp.eq.s32.totalorder %s34, 1
      %p218 = por %p216, %p217
      %p219 = scmp.ne.s32.totalorder %s208, %s209
      %p220 = scmp.eq.s32.totalorder %s34, 0
      %p221 = por %p219, %p220
      %p222 = scmp.ne.s32.totalorder %s208, %s209
      %p223 = scmp.eq.s32.totalorder %s35, 1
      %p224 = por %p222, %p223
      %p226 = scmp.ne.s32.totalorder %s209, %s225
      %p227 = scmp.eq.s32.totalorder %s35, 0
      %p228 = por %p226, %p227
      %s229 = ssub.s32 %s36, %s48
      %s230 = ssub.s32 %s37, %s44
      %s231 = sor.u32 %s229, %s230
      %p232 = scmp.eq.s32.totalorder %s231, 0
      %s234 = sadd.s32 %s233, 1
      %s235 = scalar_select %p232, %s233, %s234
      %p238 = pneg %p232
      %p239 = scmp.eq.s32.totalorder %s29, 1
      %p240 = por %p238, %p239
      %p241 = scmp.ne.s32.totalorder %s233, %s236
      %p242 = scmp.eq.s32.totalorder %s29, 0
      %p243 = por %p241, %p242
      %p244 = scmp.ne.s32.totalorder %s233, %s236
      %p245 = scmp.eq.s32.totalorder %s34, 1
      %p246 = por %p244, %p245
      %p247 = scmp.ne.s32.totalorder %s236, %s237
      %p248 = scmp.eq.s32.totalorder %s34, 0
      %p249 = por %p247, %p248
      %p250 = scmp.ne.s32.totalorder %s236, %s237
      %p251 = scmp.eq.s32.totalorder %s35, 1
      %p252 = por %p250, %p251
      %p254 = scmp.ne.s32.totalorder %s237, %s253
      %p255 = scmp.eq.s32.totalorder %s35, 0
      %p256 = por %p254, %p255
      %s257 = ssub.s32 %s36, %s48
      %s258 = ssub.s32 %s37, %s44
      %s259 = sor.u32 %s257, %s258
      %p260 = scmp.eq.s32.totalorder %s259, 0
      %s262 = sadd.s32 %s261, 1
      %s263 = scalar_select %p260, %s261, %s262
      %p266 = pneg %p260
      %p267 = scmp.eq.s32.totalorder %s29, 1
      %p268 = por %p266, %p267
      %p269 = scmp.ne.s32.totalorder %s261, %s264
      %p270 = scmp.eq.s32.totalorder %s29, 0
      %p271 = por %p269, %p270
      %p272 = scmp.ne.s32.totalorder %s261, %s264
      %p273 = scmp.eq.s32.totalorder %s34, 1
      %p274 = por %p272, %p273
      %p275 = scmp.ne.s32.totalorder %s264, %s265
      %p276 = scmp.eq.s32.totalorder %s34, 0
      %p277 = por %p275, %p276
      %p278 = scmp.ne.s32.totalorder %s264, %s265
      %p279 = scmp.eq.s32.totalorder %s35, 1
      %p280 = por %p278, %p279
      %p282 = scmp.ne.s32.totalorder %s265, %s281
      %p283 = scmp.eq.s32.totalorder %s35, 0
      %p284 = por %p282, %p283
      %s285 = ssub.s32 %s36, %s48
      %s286 = ssub.s32 %s37, %s44
      %s287 = sor.u32 %s285, %s286
      %p288 = scmp.eq.s32.totalorder %s287, 0
      %s290 = sadd.s32 %s289, 1
      %s291 = scalar_select %p288, %s289, %s290
      %p294 = pneg %p288
      %p295 = scmp.eq.s32.totalorder %s29, 1
      %p296 = por %p294, %p295
      %p297 = scmp.ne.s32.totalorder %s289, %s292
      %p298 = scmp.eq.s32.totalorder %s29, 0
      %p299 = por %p297, %p298
      %p300 = scmp.ne.s32.totalorder %s289, %s292
      %p301 = scmp.eq.s32.totalorder %s34, 1
      %p302 = por %p300, %p301
      %p303 = scmp.ne.s32.totalorder %s292, %s293
      %p304 = scmp.eq.s32.totalorder %s34, 0
      %p305 = por %p303, %p304
      %p306 = scmp.ne.s32.totalorder %s292, %s293
      %p307 = scmp.eq.s32.totalorder %s35, 1
      %p308 = por %p306, %p307
      %p310 = scmp.ne.s32.totalorder %s293, %s309
      %p311 = scmp.eq.s32.totalorder %s35, 0
      %p312 = por %p310, %p311
      %p313 = scmp.le.s32.totalorder 1, %s29
      %p314 = scmp.lt.s32.totalorder %s29, 3
      %p315 = pnand %p313, %p314
      %p316 = pneg %p315
      // Predicated region
      $region9: #{tpu_custom_call.1} parent=5 // pred_check
        _
      $region10: #{tpu_custom_call.1} parent=5 // pred_check_branch
        %318 = sbr.rel (%p315) target = $region12
      $region11: #{tpu_custom_call.1} parent=5 // pred_region
        %s319 = ssub.s32 %s29, 1
        // Predicated region
        $region13: #{tpu_custom_call.1} parent=11 // pred_check
          %p320 = pneg %p90
        $region14: #{tpu_custom_call.1} parent=11 // pred_check_branch
          %322 = sbr.rel (%p320) target = $region16
        $region15: #{tpu_custom_call.1} parent=11 // pred_region
          %324 = vsyncadd [#allocation7], 0
          %s326 = sshll.u32 %s1, 4
          %s327 = int_to_ptr.hbm [resolvable:$true] %s326
          %s328 = sshll.u32 [#allocation6], 4
          %s329 = int_to_ptr.vmem [resolvable:$true] %s328
          %331 = dma.hbm_to_vmem [thread:$0]  %s327, 16, %s329, [#allocation7]
        $region16: #{tpu_custom_call.1} parent=11 // pred_fallthru
          _
        // Predicated region
        $region17: #{tpu_custom_call.1} parent=11 // pred_check
          %p332 = pneg %p111
        $region18: #{tpu_custom_call.1} parent=11 // pred_check_branch
          %334 = sbr.rel (%p332) target = $region20
        $region19: #{tpu_custom_call.1} parent=11 // pred_region
          %336 = vsyncadd [#allocation7], 0
          %s337 = sshll.u32 %s2, 4
          %s338 = int_to_ptr.hbm [resolvable:$true] %s337
          %s339 = sshll.u32 [#allocation8], 4
          %s340 = int_to_ptr.vmem [resolvable:$true] %s339
          %345 = dma.hbm_to_vmem [thread:$0]  %s338, 512, %s340, [#allocation7], 128, 128, 8
        $region20: #{tpu_custom_call.1} parent=11 // pred_fallthru
          _
        // Predicated region
        $region21: #{tpu_custom_call.1} parent=11 // pred_check
          %p346 = pneg %p132
        $region22: #{tpu_custom_call.1} parent=11 // pred_check_branch
          %348 = sbr.rel (%p346) target = $region24
        $region23: #{tpu_custom_call.1} parent=11 // pred_region
          %350 = vsyncadd [#allocation10], 0
          %s351 = sshll.u32 %s3, 4
          %s352 = int_to_ptr.hbm [resolvable:$true] %s351
          %s353 = sshll.u32 [#allocation9], 4
          %s354 = int_to_ptr.vmem [resolvable:$true] %s353
          %359 = dma.hbm_to_vmem [thread:$0]  %s352, 512, %s354, [#allocation10], 128, 128, 8
        $region24: #{tpu_custom_call.1} parent=11 // pred_fallthru
          _
        // Predicated region
        $region25: #{tpu_custom_call.1} parent=11 // pred_check
          %p360 = pneg %p153
        $region26: #{tpu_custom_call.1} parent=11 // pred_check_branch
          %362 = sbr.rel (%p360) target = $region28
        $region27: #{tpu_custom_call.1} parent=11 // pred_region
          %364 = vsyncadd [#allocation10], 0
          %s365 = sshll.u32 %s4, 4
          %s366 = int_to_ptr.hbm [resolvable:$true] %s365
          %s367 = sshll.u32 [#allocation11], 4
          %s368 = int_to_ptr.vmem [resolvable:$true] %s367
          %373 = dma.hbm_to_vmem [thread:$0]  %s366, 512, %s368, [#allocation10], 128, 128, 8
        $region28: #{tpu_custom_call.1} parent=11 // pred_fallthru
          _
        // Predicated region
        $region29: #{tpu_custom_call.1} parent=11 // pred_check
          %p374 = pneg %p174
        $region30: #{tpu_custom_call.1} parent=11 // pred_check_branch
          %376 = sbr.rel (%p374) target = $region32
        $region31: #{tpu_custom_call.1} parent=11 // pred_region
          _
        $region32: #{tpu_custom_call.1} parent=11 // pred_fallthru
          _
        // Predicated region
        $region33: #{tpu_custom_call.1} parent=11 // pred_check
          %p377 = pneg %p195
        $region34: #{tpu_custom_call.1} parent=11 // pred_check_branch
          %379 = sbr.rel (%p377) target = $region36
        $region35: #{tpu_custom_call.1} parent=11 // pred_region
          _
        $region36: #{tpu_custom_call.1} parent=11 // pred_fallthru
          _
        // Predicated region
        $region37: #{tpu_custom_call.1} parent=11 // pred_check
          %p380 = pneg %p221
        $region38: #{tpu_custom_call.1} parent=11 // pred_check_branch
          %382 = sbr.rel (%p380) target = $region40
        $region39: #{tpu_custom_call.1} parent=11 // pred_region
          %384 = vsyncadd [#allocation13], 0
          %s385 = smul.addr %s39, 8
          %s386 = scalar_lea.hbm %s7, %s385
          %s387 = sshll.u32 %s386, 4
          %s388 = int_to_ptr.hbm [resolvable:$true] %s387
          %s389 = sshll.u32 [#allocation12], 4
          %s390 = int_to_ptr.vmem [resolvable:$true] %s389
          %395 = dma.hbm_to_vmem [thread:$0]  %s388, 384, %s390, [#allocation13], 128, 128, 8
        $region40: #{tpu_custom_call.1} parent=11 // pred_fallthru
          _
      $region12: #{tpu_custom_call.1} parent=5 // pred_fallthru
        _
      %p396 = scmp.lt.s32.totalorder %s29, 2
      // Predicated region
      $region41: #{tpu_custom_call.1} parent=5 // pred_check
        %p397 = pneg %p396
      $region42: #{tpu_custom_call.1} parent=5 // pred_check_branch
        %399 = sbr.rel (%p397) target = $region44
      $region43: #{tpu_custom_call.1} parent=5 // pred_region
        // Predicated region
        $region45: #{tpu_custom_call.1} parent=43 // pred_check
          %p400 = pneg %p63
        $region46: #{tpu_custom_call.1} parent=43 // pred_check_branch
          %402 = sbr.rel (%p400) target = $region48
        $region47: #{tpu_custom_call.1} parent=43 // pred_region
          %s403 = sand.u32 %s53, 1
          %s404 = scalar_lea.sflag [#allocation4], %s403
          %s405 = sand.u32 %s53, 1
          %s406 = smul.addr %s405, 8
          %s407 = scalar_lea.vmem [#allocation3], %s406
          %409 = vsyncadd %s404, 0
          %s410 = sadd.s32 %s37, %s36
          %s411 = smul.addr %s410, 8
          %s412 = scalar_lea.hbm %s0, %s411
          %s414 = sshll.u32 %s412, 4
          %s415 = int_to_ptr.hbm [resolvable:$true] %s414
          %s416 = sshll.u32 %s407, 4
          %s417 = int_to_ptr.vmem [resolvable:$true] %s416
          %419 = dma.hbm_to_vmem [thread:$0]  %s415, 128, %s417, %s404
        $region48: #{tpu_custom_call.1} parent=43 // pred_fallthru
          _
      $region44: #{tpu_custom_call.1} parent=5 // pred_fallthru
        _
      %p420 = scmp.le.s32.totalorder 1, %s29
      %p421 = scmp.lt.s32.totalorder %s29, 3
      %p422 = pnand %p420, %p421
      %p423 = pneg %p422
      // Predicated region
      $region49: #{tpu_custom_call.1} parent=5 // pred_check
        _
      $region50: #{tpu_custom_call.1} parent=5 // pred_check_branch
        %425 = sbr.rel (%p422) target = $region52
      $region51: #{tpu_custom_call.1} parent=5 // pred_region
        %s426 = ssub.s32 %s29, 1
        %s427 = sand.u32 %s56, 1
        %s428 = scalar_lea.sflag [#allocation4], %s427
        %s429 = sand.u32 %s56, 1
        %s430 = smul.addr %s429, 8
        %s431 = scalar_lea.vmem [#allocation3], %s430
        // Predicated region
        $region53: #{tpu_custom_call.1} parent=51 // pred_check
          %p432 = pneg %p69
        $region54: #{tpu_custom_call.1} parent=51 // pred_check_branch
          %434 = sbr.rel (%p432) target = $region56
        $region55: #{tpu_custom_call.1} parent=51 // pred_region
          %436 = dma.done %s428, 128
        $region56: #{tpu_custom_call.1} parent=51 // pred_fallthru
          _
        // Predicated region
        $region57: #{tpu_custom_call.1} parent=51 // pred_check
          %p437 = pneg %p90
        $region58: #{tpu_custom_call.1} parent=51 // pred_check_branch
          %439 = sbr.rel (%p437) target = $region60
        $region59: #{tpu_custom_call.1} parent=51 // pred_region
          %441 = dma.done [#allocation7], 16
        $region60: #{tpu_custom_call.1} parent=51 // pred_fallthru
          _
        // Predicated region
        $region61: #{tpu_custom_call.1} parent=51 // pred_check
          %p442 = pneg %p111
        $region62: #{tpu_custom_call.1} parent=51 // pred_check_branch
          %444 = sbr.rel (%p442) target = $region64
        $region63: #{tpu_custom_call.1} parent=51 // pred_region
          %446 = dma.done [#allocation7], 512
        $region64: #{tpu_custom_call.1} parent=51 // pred_fallthru
          _
        // Predicated region
        $region65: #{tpu_custom_call.1} parent=51 // pred_check
          %p447 = pneg %p132
        $region66: #{tpu_custom_call.1} parent=51 // pred_check_branch
          %449 = sbr.rel (%p447) target = $region68
        $region67: #{tpu_custom_call.1} parent=51 // pred_region
          %451 = dma.done [#allocation10], 512
        $region68: #{tpu_custom_call.1} parent=51 // pred_fallthru
          _
        // Predicated region
        $region69: #{tpu_custom_call.1} parent=51 // pred_check
          %p452 = pneg %p153
        $region70: #{tpu_custom_call.1} parent=51 // pred_check_branch
          %454 = sbr.rel (%p452) target = $region72
        $region71: #{tpu_custom_call.1} parent=51 // pred_region
          %456 = dma.done [#allocation10], 512
        $region72: #{tpu_custom_call.1} parent=51 // pred_fallthru
          _
        // Predicated region
        $region73: #{tpu_custom_call.1} parent=51 // pred_check
          %p457 = pneg %p221
        $region74: #{tpu_custom_call.1} parent=51 // pred_check_branch
          %459 = sbr.rel (%p457) target = $region76
        $region75: #{tpu_custom_call.1} parent=51 // pred_region
          %461 = dma.done [#allocation13], 384
        $region76: #{tpu_custom_call.1} parent=51 // pred_fallthru
          _
        %s462 = sand.u32 %s56, 1
        %s463 = scalar_lea.sflag [#allocation4], %s462
        %s464 = sand.u32 %s56, 1
        %s465 = smul.addr %s464, 8
        %s466 = scalar_lea.vmem [#allocation3], %s465
        %p467 = pneg %p69
        %p468 = pneg %p66
        %p469 = pneg %p90
        %p470 = pneg %p87
        %p471 = pneg %p111
        %p472 = pneg %p108
        %p473 = pneg %p132
        %p474 = pneg %p129
        %p475 = pneg %p153
        %p476 = pneg %p150
        %p477 = pneg %p174
        %p478 = pneg %p171
        %p479 = pneg %p195
        %p480 = pneg %p192
        %p481 = pneg %p221
        %p482 = pneg %p218
        %p483 = pneg %p249
        %p484 = pneg %p246
        %s485 = sand.u32 %s236, 1
        %s486 = scalar_lea.sflag [#allocation5], %s485
        %s487 = sand.u32 %s236, 1
        %s488 = smul.addr %s487, 32
        %s489 = scalar_lea.vmem [#allocation14], %s488
        %p490 = pneg %p277
        %p491 = pneg %p274
        %s492 = sand.u32 %s34, 1
        %s493 = scalar_lea.sflag [#allocation16], %s492
        %s494 = sand.u32 %s264, 1
        %s495 = smul.addr %s494, 32
        %s496 = scalar_lea.vmem [#allocation15], %s495
        %p497 = pneg %p305
        %p498 = pneg %p302
        %s499 = sand.u32 %s34, 1
        %s500 = scalar_lea.sflag [#allocation16], %s499
        %s501 = sand.u32 %s292, 1
        %s502 = smul.addr %s501, 32
        %s503 = scalar_lea.vmem [#allocation17], %s502
        %v504 = vld [vmem:[%s431] sm:$0xff]
        %vm505 = vcmask 261120
        %v506 = vsel %vm505, %v504, 0.0
        %507 = vadd.xlane.f32.xlu0 %v506
        %v508 = vpop.xlane.xlu0 %507
        %v509 = vrcp.pop 32.0
        %v510 = vmul.f32 32.0, %v509
        %v511 = vsub.f32 1.0, %v510
        %v512 = vmul.f32 %v509, %v511
        %v513 = vadd.f32 %v509, %v512
        %vm514 = vweird.f32 %v509
        %v515 = vsel %vm514, %v509, %v513
        %v516 = vmul.f32 %v508, %v515
        %v517 = vsub.f32 %v504, %v516
        %v518 = vmul.f32 %v517, %v517
        %v519 = vsel %vm505, %v518, 0.0
        %520 = vadd.xlane.f32.xlu0 %v519
        %v521 = vpop.xlane.xlu0 %520
        %v522 = vmul.f32 %v521, %v515
        %v523 = vadd.f32 %v522, 1e-05
        %v524 = vrsqrt.pop %v523
        %v525 = vmul.f32 %v524, %v523
        %v526 = vmul.f32 %v525, %v524
        %v527 = vmul.f32 0.5, %v526
        %v528 = vsub.f32 1.5, %v527
        %v529 = vmul.f32 %v524, %v528
        %vm530 = vweird.f32 %v523
        %vm531 = vweird.f32 %v524
        %vm532 = vmor %vm530, %vm531
        %v533 = vsel %vm532, %v524, %v529
        %v534 = vmul.f32 %v517, %v533
        %v535 = vld [vmem:[#allocation6] sm:$0x1]
        %v537 = vperm.slane %v535, 0
        %v539 = vmul.f32 %v534, %v537
        %v540 = vld [vmem:[#allocation12] sm:$0xff]
        %s541 = scalar_lea.vmem [#allocation12], 8
        %v542 = vld [vmem:[%s541] sm:$0xff]
        %s543 = scalar_lea.vmem [#allocation12], 16
        %v544 = vld [vmem:[%s543] sm:$0xff]
        %v545 = vld [vmem:[%s5] sm:$0x1]
        %v546 = vmul.f32 %v545, 8.0
        %v547 = vld [vmem:[%s6] sm:$0x1]
        %v548 = vld [vmem:[#allocation8] sm:$0xff]
        %v549 = vld [vmem:[#allocation8 + $0x8] sm:$0xff]
        %v550 = vld [vmem:[#allocation8 + $0x10] sm:$0xff]
        %v551 = vld [vmem:[#allocation8 + $0x18] sm:$0xff]
        %v553 = vsel %vm505, %v539, 0
        %555 = vmatpush.msra.mxu0 0.0
        %556 = vmatpush.msra.mxu0 0.0
        %557 = vmatpush.msra.mxu0 0.0
        %558 = vmatpush.msra.mxu0 0.0
        %559 = vmatpush.msra.mxu0 0.0
        %560 = vmatpush.msra.mxu0 0.0
        %561 = vmatpush.msra.mxu0 0.0
        %562 = vmatpush.msra.mxu0 0.0
        %563 = vmatpush.msra.mxu0 0.0
        %564 = vmatpush.msra.mxu0 0.0
        %565 = vmatpush.msra.mxu0 0.0
        %566 = vmatpush.msra.mxu0 0.0
        %567 = vmatpush.msra.mxu0 %v551
        %568 = vmatpush.msra.mxu0 %v550
        %569 = vmatpush.msra.mxu0 %v549
        %570 = vmatpush.msra.mxu0 %v548
        %571 = vmatmul.f32.gmra.mxu0 %v553
        %v572 = vpop.f32.mrf.mxu0
        %v573 = vadd.f32 0.0, %v572
        %574 = vdwg.mxu0
        %vm575 = vcmask 523264
        %576 = vst.msk [vmem:[#allocation2] sm:$0xff] %vm575, %v573
        %v577 = vld [vmem:[#allocation2] sm:$0xff]
        %v578 = vmul.f32 %v577, %v540
        %580 = vrot.lane.b32.xlu0 %v577, 113
        %v581 = vpop.permute.xlu0 %580
        %583 = vrot.lane.b32.xlu0 %v577, 1
        %v584 = vpop.permute.xlu0 %583
        %vm586 = vcmask 7168
        %v587 = vsel %vm586, %v581, %v584
        %v588 = vmul.f32 %v587, %v542
        %v589 = vadd.f32 %v578, %v588
        %590 = vrot.lane.b32.xlu0 %v577, 127
        %v591 = vpop.permute.xlu0 %590
        %593 = vrot.lane.b32.xlu0 %v577, 15
        %v594 = vpop.permute.xlu0 %593
        %vm596 = vcmask 121856
        %v597 = vsel %vm596, %v591, %v594
        %v598 = vmul.f32 %v597, %v544
        %v599 = vadd.f32 %v589, %v598
        %v600 = vmul.f32 %v599, %v599
        %vm601 = vcmask 130048
        %v602 = vsel %vm601, %v600, 0.0
        %603 = vadd.xlane.f32.xlu0 %v602
        %v604 = vpop.xlane.xlu0 %603
        %v605 = vmax.f32 %v604, 1e-24
        %v606 = vrsqrt.pop %v605
        %v607 = vmul.f32 %v606, %v605
        %v608 = vmul.f32 %v607, %v606
        %v609 = vmul.f32 0.5, %v608
        %v610 = vsub.f32 1.5, %v609
        %v611 = vmul.f32 %v606, %v610
        %vm612 = vweird.f32 %v605
        %vm613 = vweird.f32 %v606
        %vm614 = vmor %vm612, %vm613
        %v615 = vsel %vm614, %v606, %v611
        %v616 = vmul.f32 %v599, %v615
        %v618 = vperm.slane %v546, 0
        %v620 = vmul.f32 %v616, %v618
        %621 = vst.msk [vmem:[%s489] sm:$0xff] %vm601, %v620
        %v622 = vld [vmem:[#allocation2] sm:$0xff]
        %624 = vrot.lane.b32.xlu0 %v540, 16
        %v625 = vpop.permute.xlu0 %624
        %v627 = vmul.f32 %v622, %v625
        %629 = vrot.lane.b32.xlu0 %v622, 97
        %v630 = vpop.permute.xlu0 %629
        %632 = vrot.lane.b32.xlu0 %v622, 113
        %v633 = vpop.permute.xlu0 %632
        %v635 = vsel %vm586, %v630, %v633
        %v636 = vmul.f32 %v635, %v542
        %638 = vrot.lane.b32.xlu0 %v636, 16
        %v639 = vpop.permute.xlu0 %638
        %v641 = vadd.f32 %v627, %v639
        %642 = vrot.lane.b32.xlu0 %v622, 111
        %v643 = vpop.permute.xlu0 %642
        %645 = vrot.lane.b32.xlu0 %v622, 127
        %v646 = vpop.permute.xlu0 %645
        %v648 = vsel %vm596, %v643, %v646
        %v649 = vmul.f32 %v648, %v544
        %651 = vrot.lane.b32.xlu0 %v649, 16
        %v652 = vpop.permute.xlu0 %651
        %v654 = vadd.f32 %v641, %v652
        %v655 = vmul.f32 %v654, %v654
        %657 = vrot.lane.b32.xlu0 %v655, 112
        %v658 = vpop.permute.xlu0 %657
        %v660 = vsel %vm601, %v658, 0.0
        %661 = vadd.xlane.f32.xlu0 %v660
        %v662 = vpop.xlane.xlu0 %661
        %v663 = vmax.f32 %v662, 1e-24
        %v664 = vrsqrt.pop %v663
        %v665 = vmul.f32 %v664, %v663
        %v666 = vmul.f32 %v665, %v664
        %v667 = vmul.f32 0.5, %v666
        %v668 = vsub.f32 1.5, %v667
        %v669 = vmul.f32 %v664, %v668
        %vm670 = vweird.f32 %v663
        %vm671 = vweird.f32 %v664
        %vm672 = vmor %vm670, %vm671
        %v673 = vsel %vm672, %v664, %v669
        %v674 = vmul.f32 %v654, %v673
        %675 = vrot.lane.b32.xlu0 %v618, 16
        %v676 = vpop.permute.xlu0 %675
        %v678 = vmul.f32 %v674, %v676
        %680 = vrot.lane.b32.xlu0 %v678, 112
        %v681 = vpop.permute.xlu0 %680
        %s683 = scalar_lea.vmem %s489, 8 [#allocation14]
        %684 = vst.msk [vmem:[%s683] sm:$0xff] %vm601, %v681
        %v685 = vld [vmem:[#allocation2] sm:$0xff]
        %686 = vrot.lane.b32.xlu0 %v540, 32
        %v687 = vpop.permute.xlu0 %686
        %v689 = vmul.f32 %v685, %v687
        %691 = vrot.lane.b32.xlu0 %v685, 81
        %v692 = vpop.permute.xlu0 %691
        %694 = vrot.lane.b32.xlu0 %v685, 97
        %v695 = vpop.permute.xlu0 %694
        %v697 = vsel %vm586, %v692, %v695
        %v698 = vmul.f32 %v697, %v542
        %700 = vrot.lane.b32.xlu0 %v698, 32
        %v701 = vpop.permute.xlu0 %700
        %v703 = vadd.f32 %v689, %v701
        %704 = vrot.lane.b32.xlu0 %v685, 95
        %v705 = vpop.permute.xlu0 %704
        %707 = vrot.lane.b32.xlu0 %v685, 111
        %v708 = vpop.permute.xlu0 %707
        %v710 = vsel %vm596, %v705, %v708
        %v711 = vmul.f32 %v710, %v544
        %713 = vrot.lane.b32.xlu0 %v711, 32
        %v714 = vpop.permute.xlu0 %713
        %v716 = vadd.f32 %v703, %v714
        %v717 = vmul.f32 %v716, %v716
        %719 = vrot.lane.b32.xlu0 %v717, 96
        %v720 = vpop.permute.xlu0 %719
        %v722 = vsel %vm601, %v720, 0.0
        %723 = vadd.xlane.f32.xlu0 %v722
        %v724 = vpop.xlane.xlu0 %723
        %v725 = vmax.f32 %v724, 1e-24
        %v726 = vrsqrt.pop %v725
        %v727 = vmul.f32 %v726, %v725
        %v728 = vmul.f32 %v727, %v726
        %v729 = vmul.f32 0.5, %v728
        %v730 = vsub.f32 1.5, %v729
        %v731 = vmul.f32 %v726, %v730
        %vm732 = vweird.f32 %v725
        %vm733 = vweird.f32 %v726
        %vm734 = vmor %vm732, %vm733
        %v735 = vsel %vm734, %v726, %v731
        %v736 = vmul.f32 %v716, %v735
        %737 = vrot.lane.b32.xlu0 %v618, 32
        %v738 = vpop.permute.xlu0 %737
        %v740 = vmul.f32 %v736, %v738
        %742 = vrot.lane.b32.xlu0 %v740, 96
        %v743 = vpop.permute.xlu0 %742
        %s745 = scalar_lea.vmem %s489, 16 [#allocation14]
        %746 = vst.msk [vmem:[%s745] sm:$0xff] %vm601, %v743
        %v747 = vld [vmem:[#allocation2] sm:$0xff]
        %748 = vrot.lane.b32.xlu0 %v540, 48
        %v749 = vpop.permute.xlu0 %748
        %v751 = vmul.f32 %v747, %v749
        %753 = vrot.lane.b32.xlu0 %v747, 65
        %v754 = vpop.permute.xlu0 %753
        %756 = vrot.lane.b32.xlu0 %v747, 81
        %v757 = vpop.permute.xlu0 %756
        %v759 = vsel %vm586, %v754, %v757
        %v760 = vmul.f32 %v759, %v542
        %762 = vrot.lane.b32.xlu0 %v760, 48
        %v763 = vpop.permute.xlu0 %762
        %v765 = vadd.f32 %v751, %v763
        %766 = vrot.lane.b32.xlu0 %v747, 79
        %v767 = vpop.permute.xlu0 %766
        %769 = vrot.lane.b32.xlu0 %v747, 95
        %v770 = vpop.permute.xlu0 %769
        %v772 = vsel %vm596, %v767, %v770
        %v773 = vmul.f32 %v772, %v544
        %775 = vrot.lane.b32.xlu0 %v773, 48
        %v776 = vpop.permute.xlu0 %775
        %v778 = vadd.f32 %v765, %v776
        %v779 = vmul.f32 %v778, %v778
        %781 = vrot.lane.b32.xlu0 %v779, 80
        %v782 = vpop.permute.xlu0 %781
        %v784 = vsel %vm601, %v782, 0.0
        %785 = vadd.xlane.f32.xlu0 %v784
        %v786 = vpop.xlane.xlu0 %785
        %v787 = vmax.f32 %v786, 1e-24
        %v788 = vrsqrt.pop %v787
        %v789 = vmul.f32 %v788, %v787
        %v790 = vmul.f32 %v789, %v788
        %v791 = vmul.f32 0.5, %v790
        %v792 = vsub.f32 1.5, %v791
        %v793 = vmul.f32 %v788, %v792
        %vm794 = vweird.f32 %v787
        %vm795 = vweird.f32 %v788
        %vm796 = vmor %vm794, %vm795
        %v797 = vsel %vm796, %v788, %v793
        %v798 = vmul.f32 %v778, %v797
        %799 = vrot.lane.b32.xlu0 %v618, 48
        %v800 = vpop.permute.xlu0 %799
        %v802 = vmul.f32 %v798, %v800
        %804 = vrot.lane.b32.xlu0 %v802, 80
        %v805 = vpop.permute.xlu0 %804
        %s807 = scalar_lea.vmem %s489, 24 [#allocation14]
        %808 = vst.msk [vmem:[%s807] sm:$0xff] %vm601, %v805
        %v809 = vld [vmem:[#allocation9] sm:$0xff]
        %v810 = vld [vmem:[#allocation9 + $0x8] sm:$0xff]
        %v811 = vld [vmem:[#allocation9 + $0x10] sm:$0xff]
        %v812 = vld [vmem:[#allocation9 + $0x18] sm:$0xff]
        %813 = vmatpush.msra.mxu0 0.0
        %814 = vmatpush.msra.mxu0 0.0
        %815 = vmatpush.msra.mxu0 0.0
        %816 = vmatpush.msra.mxu0 0.0
        %817 = vmatpush.msra.mxu0 0.0
        %818 = vmatpush.msra.mxu0 0.0
        %819 = vmatpush.msra.mxu0 0.0
        %820 = vmatpush.msra.mxu0 0.0
        %821 = vmatpush.msra.mxu0 0.0
        %822 = vmatpush.msra.mxu0 0.0
        %823 = vmatpush.msra.mxu0 0.0
        %824 = vmatpush.msra.mxu0 0.0
        %825 = vmatpush.msra.mxu0 %v812
        %826 = vmatpush.msra.mxu0 %v811
        %827 = vmatpush.msra.mxu0 %v810
        %828 = vmatpush.msra.mxu0 %v809
        %829 = vmatmul.f32.gmra.mxu0 %v553
        %v830 = vpop.f32.mrf.mxu0
        %v831 = vadd.f32 0.0, %v830
        %832 = vdwg.mxu0
        %833 = vst.msk [vmem:[#allocation2] sm:$0xff] %vm575, %v831
        %v834 = vld [vmem:[#allocation2] sm:$0xff]
        %v835 = vmul.f32 %v834, %v540
        %837 = vrot.lane.b32.xlu0 %v834, 113
        %v838 = vpop.permute.xlu0 %837
        %840 = vrot.lane.b32.xlu0 %v834, 1
        %v841 = vpop.permute.xlu0 %840
        %v843 = vsel %vm586, %v838, %v841
        %v844 = vmul.f32 %v843, %v542
        %v845 = vadd.f32 %v835, %v844
        %846 = vrot.lane.b32.xlu0 %v834, 127
        %v847 = vpop.permute.xlu0 %846
        %849 = vrot.lane.b32.xlu0 %v834, 15
        %v850 = vpop.permute.xlu0 %849
        %v852 = vsel %vm596, %v847, %v850
        %v853 = vmul.f32 %v852, %v544
        %v854 = vadd.f32 %v845, %v853
        %v855 = vmul.f32 %v854, %v854
        %v856 = vsel %vm601, %v855, 0.0
        %857 = vadd.xlane.f32.xlu0 %v856
        %v858 = vpop.xlane.xlu0 %857
        %v859 = vmax.f32 %v858, 1e-24
        %v860 = vrsqrt.pop %v859
        %v861 = vmul.f32 %v860, %v859
        %v862 = vmul.f32 %v861, %v860
        %v863 = vmul.f32 0.5, %v862
        %v864 = vsub.f32 1.5, %v863
        %v865 = vmul.f32 %v860, %v864
        %vm866 = vweird.f32 %v859
        %vm867 = vweird.f32 %v860
        %vm868 = vmor %vm866, %vm867
        %v869 = vsel %vm868, %v860, %v865
        %v870 = vmul.f32 %v854, %v869
        %v872 = vperm.slane %v547, 0
        %v874 = vmul.f32 %v870, %v872
        %875 = vst.msk [vmem:[%s496] sm:$0xff] %vm601, %v874
        %v876 = vld [vmem:[#allocation2] sm:$0xff]
        %v877 = vmul.f32 %v876, %v625
        %879 = vrot.lane.b32.xlu0 %v876, 97
        %v880 = vpop.permute.xlu0 %879
        %882 = vrot.lane.b32.xlu0 %v876, 113
        %v883 = vpop.permute.xlu0 %882
        %v885 = vsel %vm586, %v880, %v883
        %v886 = vmul.f32 %v885, %v542
        %888 = vrot.lane.b32.xlu0 %v886, 16
        %v889 = vpop.permute.xlu0 %888
        %v891 = vadd.f32 %v877, %v889
        %892 = vrot.lane.b32.xlu0 %v876, 111
        %v893 = vpop.permute.xlu0 %892
        %895 = vrot.lane.b32.xlu0 %v876, 127
        %v896 = vpop.permute.xlu0 %895
        %v898 = vsel %vm596, %v893, %v896
        %v899 = vmul.f32 %v898, %v544
        %901 = vrot.lane.b32.xlu0 %v899, 16
        %v902 = vpop.permute.xlu0 %901
        %v904 = vadd.f32 %v891, %v902
        %v905 = vmul.f32 %v904, %v904
        %907 = vrot.lane.b32.xlu0 %v905, 112
        %v908 = vpop.permute.xlu0 %907
        %v910 = vsel %vm601, %v908, 0.0
        %911 = vadd.xlane.f32.xlu0 %v910
        %v912 = vpop.xlane.xlu0 %911
        %v913 = vmax.f32 %v912, 1e-24
        %v914 = vrsqrt.pop %v913
        %v915 = vmul.f32 %v914, %v913
        %v916 = vmul.f32 %v915, %v914
        %v917 = vmul.f32 0.5, %v916
        %v918 = vsub.f32 1.5, %v917
        %v919 = vmul.f32 %v914, %v918
        %vm920 = vweird.f32 %v913
        %vm921 = vweird.f32 %v914
        %vm922 = vmor %vm920, %vm921
        %v923 = vsel %vm922, %v914, %v919
        %v924 = vmul.f32 %v904, %v923
        %925 = vrot.lane.b32.xlu0 %v872, 16
        %v926 = vpop.permute.xlu0 %925
        %v928 = vmul.f32 %v924, %v926
        %930 = vrot.lane.b32.xlu0 %v928, 112
        %v931 = vpop.permute.xlu0 %930
        %s933 = scalar_lea.vmem %s496, 8 [#allocation15]
        %934 = vst.msk [vmem:[%s933] sm:$0xff] %vm601, %v931
        %v935 = vld [vmem:[#allocation2] sm:$0xff]
        %v936 = vmul.f32 %v935, %v687
        %938 = vrot.lane.b32.xlu0 %v935, 81
        %v939 = vpop.permute.xlu0 %938
        %941 = vrot.lane.b32.xlu0 %v935, 97
        %v942 = vpop.permute.xlu0 %941
        %v944 = vsel %vm586, %v939, %v942
        %v945 = vmul.f32 %v944, %v542
        %947 = vrot.lane.b32.xlu0 %v945, 32
        %v948 = vpop.permute.xlu0 %947
        %v950 = vadd.f32 %v936, %v948
        %951 = vrot.lane.b32.xlu0 %v935, 95
        %v952 = vpop.permute.xlu0 %951
        %954 = vrot.lane.b32.xlu0 %v935, 111
        %v955 = vpop.permute.xlu0 %954
        %v957 = vsel %vm596, %v952, %v955
        %v958 = vmul.f32 %v957, %v544
        %960 = vrot.lane.b32.xlu0 %v958, 32
        %v961 = vpop.permute.xlu0 %960
        %v963 = vadd.f32 %v950, %v961
        %v964 = vmul.f32 %v963, %v963
        %966 = vrot.lane.b32.xlu0 %v964, 96
        %v967 = vpop.permute.xlu0 %966
        %v969 = vsel %vm601, %v967, 0.0
        %970 = vadd.xlane.f32.xlu0 %v969
        %v971 = vpop.xlane.xlu0 %970
        %v972 = vmax.f32 %v971, 1e-24
        %v973 = vrsqrt.pop %v972
        %v974 = vmul.f32 %v973, %v972
        %v975 = vmul.f32 %v974, %v973
        %v976 = vmul.f32 0.5, %v975
        %v977 = vsub.f32 1.5, %v976
        %v978 = vmul.f32 %v973, %v977
        %vm979 = vweird.f32 %v972
        %vm980 = vweird.f32 %v973
        %vm981 = vmor %vm979, %vm980
        %v982 = vsel %vm981, %v973, %v978
        %v983 = vmul.f32 %v963, %v982
        %984 = vrot.lane.b32.xlu0 %v872, 32
        %v985 = vpop.permute.xlu0 %984
        %v987 = vmul.f32 %v983, %v985
        %989 = vrot.lane.b32.xlu0 %v987, 96
        %v990 = vpop.permute.xlu0 %989
        %s992 = scalar_lea.vmem %s496, 16 [#allocation15]
        %993 = vst.msk [vmem:[%s992] sm:$0xff] %vm601, %v990
        %v994 = vld [vmem:[#allocation2] sm:$0xff]
        %v995 = vmul.f32 %v994, %v749
        %997 = vrot.lane.b32.xlu0 %v994, 65
        %v998 = vpop.permute.xlu0 %997
        %1000 = vrot.lane.b32.xlu0 %v994, 81
        %v1001 = vpop.permute.xlu0 %1000
        %v1003 = vsel %vm586, %v998, %v1001
        %v1004 = vmul.f32 %v1003, %v542
        %1006 = vrot.lane.b32.xlu0 %v1004, 48
        %v1007 = vpop.permute.xlu0 %1006
        %v1009 = vadd.f32 %v995, %v1007
        %1010 = vrot.lane.b32.xlu0 %v994, 79
        %v1011 = vpop.permute.xlu0 %1010
        %1013 = vrot.lane.b32.xlu0 %v994, 95
        %v1014 = vpop.permute.xlu0 %1013
        %v1016 = vsel %vm596, %v1011, %v1014
        %v1017 = vmul.f32 %v1016, %v544
        %1019 = vrot.lane.b32.xlu0 %v1017, 48
        %v1020 = vpop.permute.xlu0 %1019
        %v1022 = vadd.f32 %v1009, %v1020
        %v1023 = vmul.f32 %v1022, %v1022
        %1025 = vrot.lane.b32.xlu0 %v1023, 80
        %v1026 = vpop.permute.xlu0 %1025
        %v1028 = vsel %vm601, %v1026, 0.0
        %1029 = vadd.xlane.f32.xlu0 %v1028
        %v1030 = vpop.xlane.xlu0 %1029
        %v1031 = vmax.f32 %v1030, 1e-24
        %v1032 = vrsqrt.pop %v1031
        %v1033 = vmul.f32 %v1032, %v1031
        %v1034 = vmul.f32 %v1033, %v1032
        %v1035 = vmul.f32 0.5, %v1034
        %v1036 = vsub.f32 1.5, %v1035
        %v1037 = vmul.f32 %v1032, %v1036
        %vm1038 = vweird.f32 %v1031
        %vm1039 = vweird.f32 %v1032
        %vm1040 = vmor %vm1038, %vm1039
        %v1041 = vsel %vm1040, %v1032, %v1037
        %v1042 = vmul.f32 %v1022, %v1041
        %1043 = vrot.lane.b32.xlu0 %v872, 48
        %v1044 = vpop.permute.xlu0 %1043
        %v1046 = vmul.f32 %v1042, %v1044
        %1048 = vrot.lane.b32.xlu0 %v1046, 80
        %v1049 = vpop.permute.xlu0 %1048
        %s1051 = scalar_lea.vmem %s496, 24 [#allocation15]
        %1052 = vst.msk [vmem:[%s1051] sm:$0xff] %vm601, %v1049
        %v1053 = vld [vmem:[#allocation11] sm:$0xff]
        %v1054 = vld [vmem:[#allocation11 + $0x8] sm:$0xff]
        %v1055 = vld [vmem:[#allocation11 + $0x10] sm:$0xff]
        %v1056 = vld [vmem:[#allocation11 + $0x18] sm:$0xff]
        %1057 = vmatpush.msra.mxu0 0.0
        %1058 = vmatpush.msra.mxu0 0.0
        %1059 = vmatpush.msra.mxu0 0.0
        %1060 = vmatpush.msra.mxu0 0.0
        %1061 = vmatpush.msra.mxu0 0.0
        %1062 = vmatpush.msra.mxu0 0.0
        %1063 = vmatpush.msra.mxu0 0.0
        %1064 = vmatpush.msra.mxu0 0.0
        %1065 = vmatpush.msra.mxu0 0.0
        %1066 = vmatpush.msra.mxu0 0.0
        %1067 = vmatpush.msra.mxu0 0.0
        %1068 = vmatpush.msra.mxu0 0.0
        %1069 = vmatpush.msra.mxu0 %v1056
        %1070 = vmatpush.msra.mxu0 %v1055
        %1071 = vmatpush.msra.mxu0 %v1054
        %1072 = vmatpush.msra.mxu0 %v1053
        %1073 = vmatmul.f32.gmra.mxu0 %v553
        %v1074 = vpop.f32.mrf.mxu0
        %v1075 = vadd.f32 0.0, %v1074
        %1076 = vdwg.mxu0
        %1077 = vst.msk [vmem:[#allocation2] sm:$0xff] %vm575, %v1075
        %v1078 = vld [vmem:[#allocation2] sm:$0xff]
        %1079 = vst.msk [vmem:[%s503] sm:$0xff] %vm601, %v1078
        %v1080 = vld [vmem:[#allocation2] sm:$0xff]
        %1082 = vrot.lane.b32.xlu0 %v1080, 112
        %v1083 = vpop.permute.xlu0 %1082
        %s1085 = scalar_lea.vmem %s503, 8 [#allocation17]
        %1086 = vst.msk [vmem:[%s1085] sm:$0xff] %vm601, %v1083
        %v1087 = vld [vmem:[#allocation2] sm:$0xff]
        %1089 = vrot.lane.b32.xlu0 %v1087, 96
        %v1090 = vpop.permute.xlu0 %1089
        %s1092 = scalar_lea.vmem %s503, 16 [#allocation17]
        %1093 = vst.msk [vmem:[%s1092] sm:$0xff] %vm601, %v1090
        %v1094 = vld [vmem:[#allocation2] sm:$0xff]
        %1096 = vrot.lane.b32.xlu0 %v1094, 80
        %v1097 = vpop.permute.xlu0 %1096
        %s1099 = scalar_lea.vmem %s503, 24 [#allocation17]
        %1100 = vst.msk [vmem:[%s1099] sm:$0xff] %vm601, %v1097
        %s1101 = sand.u32 %s236, 1
        %s1102 = scalar_lea.sflag [#allocation5], %s1101
        %s1103 = sand.u32 %s236, 1
        %s1104 = smul.addr %s1103, 32
        %s1105 = scalar_lea.vmem [#allocation14], %s1104
        %s1106 = sand.u32 %s34, 1
        %s1107 = scalar_lea.sflag [#allocation16], %s1106
        %s1108 = sand.u32 %s264, 1
        %s1109 = smul.addr %s1108, 32
        %s1110 = scalar_lea.vmem [#allocation15], %s1109
        %s1111 = sand.u32 %s34, 1
        %s1112 = scalar_lea.sflag [#allocation16], %s1111
        %s1113 = sand.u32 %s292, 1
        %s1114 = smul.addr %s1113, 32
        %s1115 = scalar_lea.vmem [#allocation17], %s1114
        // Predicated region
        $region77: #{tpu_custom_call.1} parent=51 // pred_check
          %p1116 = pneg %p246
        $region78: #{tpu_custom_call.1} parent=51 // pred_check_branch
          %1118 = sbr.rel (%p1116) target = $region80
        $region79: #{tpu_custom_call.1} parent=51 // pred_region
          %1120 = vsyncadd %s1102, 0
          %s1121 = smul.addr %s38, 4
          %s1122 = sadd.s32 %s39, %s1121
          %s1123 = smul.addr %s1122, 8
          %s1124 = scalar_lea.hbm %s8, %s1123
          %s1125 = sshll.u32 %s1105, 4
          %s1126 = int_to_ptr.vmem [resolvable:$true] %s1125
          %s1127 = sshll.u32 %s1124, 4
          %s1128 = int_to_ptr.hbm [resolvable:$true] %s1127
          %1133 = dma.vmem_to_hbm [thread:$0]  %s1126, 512, %s1128, %s1102, 128, 128, 8
        $region80: #{tpu_custom_call.1} parent=51 // pred_fallthru
          _
        // Predicated region
        $region81: #{tpu_custom_call.1} parent=51 // pred_check
          %p1134 = pneg %p274
        $region82: #{tpu_custom_call.1} parent=51 // pred_check_branch
          %1136 = sbr.rel (%p1134) target = $region84
        $region83: #{tpu_custom_call.1} parent=51 // pred_region
          %1138 = vsyncadd %s1107, 0
          %s1139 = smul.addr %s38, 4
          %s1140 = sadd.s32 %s39, %s1139
          %s1141 = smul.addr %s1140, 8
          %s1142 = scalar_lea.hbm %s9, %s1141
          %s1143 = sshll.u32 %s1110, 4
          %s1144 = int_to_ptr.vmem [resolvable:$true] %s1143
          %s1145 = sshll.u32 %s1142, 4
          %s1146 = int_to_ptr.hbm [resolvable:$true] %s1145
          %1151 = dma.vmem_to_hbm [thread:$0]  %s1144, 512, %s1146, %s1107, 128, 128, 8
        $region84: #{tpu_custom_call.1} parent=51 // pred_fallthru
          _
        // Predicated region
        $region85: #{tpu_custom_call.1} parent=51 // pred_check
          %p1152 = pneg %p302
        $region86: #{tpu_custom_call.1} parent=51 // pred_check_branch
          %1154 = sbr.rel (%p1152) target = $region88
        $region87: #{tpu_custom_call.1} parent=51 // pred_region
          %1156 = vsyncadd %s1112, 0
          %s1157 = smul.addr %s38, 4
          %s1158 = sadd.s32 %s39, %s1157
          %s1159 = smul.addr %s1158, 8
          %s1160 = scalar_lea.hbm %s10, %s1159
          %s1161 = sshll.u32 %s1115, 4
          %s1162 = int_to_ptr.vmem [resolvable:$true] %s1161
          %s1163 = sshll.u32 %s1160, 4
          %s1164 = int_to_ptr.hbm [resolvable:$true] %s1163
          %1169 = dma.vmem_to_hbm [thread:$0]  %s1162, 512, %s1164, %s1112, 128, 128, 8
        $region88: #{tpu_custom_call.1} parent=51 // pred_fallthru
          _
      $region52: #{tpu_custom_call.1} parent=5 // pred_fallthru
        _
      %p1170 = scmp.le.s32.totalorder 2, %s29
      // Predicated region
      $region89: #{tpu_custom_call.1} parent=5 // pred_check
        %p1171 = pneg %p1170
      $region90: #{tpu_custom_call.1} parent=5 // pred_check_branch
        %1173 = sbr.rel (%p1171) target = $region92
      $region91: #{tpu_custom_call.1} parent=5 // pred_region
        %s1174 = ssub.s32 %s29, 2
        // Predicated region
        $region93: #{tpu_custom_call.1} parent=91 // pred_check
          %p1175 = pneg %p252
        $region94: #{tpu_custom_call.1} parent=91 // pred_check_branch
          %1177 = sbr.rel (%p1175) target = $region96
        $region95: #{tpu_custom_call.1} parent=91 // pred_region
          %s1178 = sand.u32 %s237, 1
          %s1179 = scalar_lea.sflag [#allocation5], %s1178
          %s1180 = sand.u32 %s237, 1
          %s1181 = smul.addr %s1180, 32
          %s1182 = scalar_lea.vmem [#allocation14], %s1181
          %1184 = dma.done %s1179, 512
        $region96: #{tpu_custom_call.1} parent=91 // pred_fallthru
          _
        // Predicated region
        $region97: #{tpu_custom_call.1} parent=91 // pred_check
          %p1185 = pneg %p280
        $region98: #{tpu_custom_call.1} parent=91 // pred_check_branch
          %1187 = sbr.rel (%p1185) target = $region100
        $region99: #{tpu_custom_call.1} parent=91 // pred_region
          %s1188 = sand.u32 %s35, 1
          %s1189 = scalar_lea.sflag [#allocation16], %s1188
          %s1190 = sand.u32 %s265, 1
          %s1191 = smul.addr %s1190, 32
          %s1192 = scalar_lea.vmem [#allocation15], %s1191
          %1194 = dma.done %s1189, 512
        $region100: #{tpu_custom_call.1} parent=91 // pred_fallthru
          _
        // Predicated region
        $region101: #{tpu_custom_call.1} parent=91 // pred_check
          %p1195 = pneg %p308
        $region102: #{tpu_custom_call.1} parent=91 // pred_check_branch
          %1197 = sbr.rel (%p1195) target = $region104
        $region103: #{tpu_custom_call.1} parent=91 // pred_region
          %s1198 = sand.u32 %s35, 1
          %s1199 = scalar_lea.sflag [#allocation16], %s1198
          %s1200 = sand.u32 %s293, 1
          %s1201 = smul.addr %s1200, 32
          %s1202 = scalar_lea.vmem [#allocation17], %s1201
          %1204 = dma.done %s1199, 512
        $region104: #{tpu_custom_call.1} parent=91 // pred_fallthru
          _
      $region92: #{tpu_custom_call.1} parent=5 // pred_fallthru
        _
    $region6: #{tpu_custom_call.1} parent=1 // loop_footer
      %s33 = sadd.s32 1, %s29
    $region7: #{tpu_custom_call.1} parent=1 // loop_footer_branch
      %28 = sbr.rel target = $region3
    $region8: #{tpu_custom_call.1} parent=1 // loop_exit
      _
    %1205 = vsyncpa [#allocation4], 1
    %s1206 = scalar_lea.sflag [#allocation4], 1
    %1207 = vsyncpa %s1206, 1
    %1208 = vsyncpa [#allocation7], 1
    %1209 = vsyncpa [#allocation10], 1
    %1210 = vsyncpa [#allocation13], 1
    %1211 = vsyncpa [#allocation5], 1
    %s1212 = scalar_lea.sflag [#allocation5], 1
    %1213 = vsyncpa %s1212, 1
    %1214 = vsyncpa [#allocation16], 1
    %s1215 = scalar_lea.sflag [#allocation16], 1
    %1216 = vsyncpa %s1215, 1

</llo_original>
